<compile_context>
chip_gen: v7x
topology: tpu7x:2x2x1
jax: 0.10.0
libtpu: 0.0.40
codegen_flags: <defaults>
</compile_context>

<pallas_src>
import jax
import jax.numpy as jnp
from jax import lax
from jax.experimental import pallas as pl
from jax.experimental.pallas import tpu as pltpu

# ---- model dims (small, consistent with a sequence-classification encoder) ----
B = 2            # batch
S = 8            # sequence length
H = 32           # hidden size
NH = 2           # attention heads
HD = H // NH     # head dim
FF = 64          # ffn hidden
VOCAB = 50       # vocab size
VOCAB_PAD = 64   # padded one-hot width (multiple of 8, >= VOCAB)
NUM_LABELS = 2   # classification labels
PAD_ID = 1       # RoBERTa pad token id (input_ids.ne(1))
OUT_W = 128      # lane-dense packed output width

# ---- slab A: all [H, n] weight matrices, each lane-padded to a 128-lane block ----
_A_QKV, _A_W1, _A_WO, _A_WD, _A_WP = 0, 128, 256, 384, 512
_A_LANES = 640
# ---- slab B: row-stacked (128 lanes): w2 | tok_emb | pos_emb ----
_B_W2, _B_TOK, _B_POS = 0, FF, FF + VOCAB_PAD
_B_ROWS = FF + VOCAB_PAD + S            # 136
# ---- bias slab rows (16 x 128) ----
(_R_BQKV, _R_BO, _R_LN1G, _R_LN1B, _R_B1,
 _R_B2, _R_LN2G, _R_LN2B, _R_BD, _R_BP) = range(10)
_BIAS_ROWS = 16

_VMEM = pl.BlockSpec(memory_space=pltpu.MemorySpace.VMEM)


# ----------------------------- in-kernel helpers -----------------------------
def _gelu(v):
    # tanh-approx GELU (small drift vs exact erf GELU)
    c = jnp.float32(0.7978845608028654)  # sqrt(2/pi)
    return 0.5 * v * (1.0 + jnp.tanh(c * (v + 0.044715 * v * v * v)))


def _layer_norm(v, g, b, eps=1e-5):
    mu = jnp.mean(v, axis=-1, keepdims=True)
    var = jnp.mean((v - mu) * (v - mu), axis=-1, keepdims=True)
    return (v - mu) * lax.rsqrt(var + eps) * g + b


# ------------------------- single fused forward kernel -------------------------
def _make_kernel(with_loss):
    def kernel(*refs):
        if with_loss:
            ids_ref, mask_ref, labels_ref, wa_ref, wb_ref, bias_ref, out_ref = refs
        else:
            ids_ref, mask_ref, wa_ref, wb_ref, bias_ref, out_ref = refs
        f32 = jnp.float32

        # ---- static slab views (aligned offsets; no per-parameter DMAs) ----
        w_qkv = wa_ref[:, _A_QKV:_A_QKV + 3 * H]            # (H, 3H)
        w1 = wa_ref[:, _A_W1:_A_W1 + FF]                    # (H, FF)
        wo = wa_ref[:, _A_WO:_A_WO + H]                     # (H, H)
        wd = wa_ref[:, _A_WD:_A_WD + H]                     # (H, H)
        wp = wa_ref[:, _A_WP:_A_WP + OUT_W]                 # (H, 128) classifier, duplicated lanes
        w2 = wb_ref[_B_W2:_B_W2 + FF, 0:H]                  # (FF, H)
        tok = wb_ref[_B_TOK:_B_TOK + VOCAB_PAD, 0:H]        # (VOCAB_PAD, H)
        pos = wb_ref[_B_POS:_B_POS + S, 0:H]                # (S, H)
        b_qkv = bias_ref[_R_BQKV:_R_BQKV + 1, 0:3 * H]
        bo = bias_ref[_R_BO:_R_BO + 1, 0:H]
        ln1g = bias_ref[_R_LN1G:_R_LN1G + 1, 0:H]
        ln1b = bias_ref[_R_LN1B:_R_LN1B + 1, 0:H]
        b1 = bias_ref[_R_B1:_R_B1 + 1, 0:FF]
        b2 = bias_ref[_R_B2:_R_B2 + 1, 0:H]
        ln2g = bias_ref[_R_LN2G:_R_LN2G + 1, 0:H]
        ln2b = bias_ref[_R_LN2B:_R_LN2B + 1, 0:H]
        bd = bias_ref[_R_BD:_R_BD + 1, 0:H]
        bp = bias_ref[_R_BP:_R_BP + 1, :]                   # (1, 128)

        # ---- embedding: one-hot matmul + positional (broadcast add, no concats) ----
        # TODO(synk): for real vocab sizes use an HBM row-gather DMA instead.
        ids = ids_ref[...]                                                   # (B*S, 1) int32
        onehot = (lax.broadcasted_iota(jnp.int32, (B * S, VOCAB_PAD), 1) == ids).astype(f32)
        x3 = (jnp.dot(onehot, tok, preferred_element_type=f32).reshape(B, S, H)
              + pos[None, :, :])                                             # (B, S, H)
        x_cls = x3[:, 0, :]                                                  # (B, H)

        # ---- fused QKV projection on flattened activations ----
        qkv = jnp.dot(x3.reshape(B * S, H), w_qkv, preferred_element_type=f32) + b_qkv
        qkv3 = qkv.reshape(B, S, 3 * H)                                      # (B, S, 3H)
        q_cls = qkv3[:, 0:1, 0:H]                                            # (B, 1, H): CLS query only

        # ---- additive attention bias, computed once (0 keep / -1e9 pad) ----
        bias3 = ((mask_ref[...] - 1.0) * f32(1e9))[:, None, :]               # (B, 1, S)
        scale = f32(1.0 / (HD ** 0.5))

        # ---- CLS-query multi-head attention, batched over B (per-head loop, NH=2) ----
        ctx_heads = []
        for h in range(NH):
            q_h = q_cls[:, :, h * HD:(h + 1) * HD]                           # (B, 1, HD)
            k_h = qkv3[:, :, H + h * HD:H + (h + 1) * HD]                    # (B, S, HD)
            v_h = qkv3[:, :, 2 * H + h * HD:2 * H + (h + 1) * HD]            # (B, S, HD)
            s_h = jnp.einsum('bqd,bkd->bqk', q_h, k_h,
                             preferred_element_type=f32) * scale + bias3     # (B, 1, S)
            m_h = jnp.max(s_h, axis=-1, keepdims=True)
            e_h = jnp.exp(s_h - m_h)
            p_h = e_h * pl.reciprocal(jnp.sum(e_h, axis=-1, keepdims=True), approx=True)
            ctx_heads.append(jnp.einsum('bqk,bkd->bqd', p_h, v_h,
                                        preferred_element_type=f32))         # (B, 1, HD)
        ctx = jnp.concatenate(ctx_heads, axis=-1)[:, 0, :]                   # (B, H)

        attn = jnp.dot(ctx, wo, preferred_element_type=f32) + bo             # (B, H)
        y = _layer_norm(x_cls + attn, ln1g, ln1b)

        # ---- feed-forward on CLS rows only ----
        h1 = _gelu(jnp.dot(y, w1, preferred_element_type=f32) + b1)
        h2 = jnp.dot(h1, w2, preferred_element_type=f32) + b2
        hid = _layer_norm(y + h2, ln2g, ln2b)                                # (B, H)

        # ---- classification head directly into the 128-lane packed layout ----
        t = jnp.tanh(jnp.dot(hid, wd, preferred_element_type=f32) + bd)
        # wp/bp carry the (H,2) classifier twice: lanes [0,2) and [2,4); rest zero.
        logits_dup = jnp.dot(t, wp, preferred_element_type=f32) + bp         # (B, 128)

        lane = lax.broadcasted_iota(jnp.int32, (B, OUT_W), 1)
        prob_region = jnp.logical_and(lane >= NUM_LABELS, lane < 2 * NUM_LABELS)
        masked = jnp.where(prob_region, logits_dup, f32(-1e30))
        m = jnp.max(masked, axis=-1, keepdims=True)
        shifted = masked - m
        e = jnp.exp(shifted)                                                 # nonzero only in lanes [2,4)
        sumexp = jnp.sum(e, axis=-1, keepdims=True)
        prob_part = e / sumexp                                               # exact divide (torch parity)

        # packed row: lanes [0,2)=logits, [2,4)=prob, [4]=loss (training), rest 0
        out = jnp.where(lane < NUM_LABELS, logits_dup, f32(0.0)) + prob_part

        if with_loss:
            # ---- cross entropy, vectorized over batch via lane-iota one-hot ----
            logp = shifted - jnp.log(sumexp)                                 # valid in lanes [2,4)
            lab = labels_ref[...]                                            # (B, 1) int32
            picked = jnp.sum(jnp.where(lane == lab + NUM_LABELS, logp, f32(0.0)),
                             axis=-1, keepdims=True)                         # (B, 1)
            nll = -jnp.sum(picked, axis=0, keepdims=True) * f32(1.0 / B)     # (1, 1)
            out = out + jnp.where(lane == 2 * NUM_LABELS, nll, f32(0.0))

        out_ref[...] = out
    return kernel


_infer_call = pl.pallas_call(
    _make_kernel(with_loss=False),
    out_shape=jax.ShapeDtypeStruct((B, OUT_W), jnp.float32),
    in_specs=[_VMEM] * 5,
    out_specs=_VMEM,
)
_train_call = pl.pallas_call(
    _make_kernel(with_loss=True),
    out_shape=jax.ShapeDtypeStruct((B, OUT_W), jnp.float32),
    in_specs=[_VMEM] * 6,
    out_specs=_VMEM,
)


# --------------------------------- parameters ---------------------------------
def init_params(key):
    ks = jax.random.split(key, 8)
    sd = 0.02
    return {
        'tok_emb': sd * jax.random.normal(ks[0], (VOCAB, H), jnp.float32),
        'pos_emb': sd * jax.random.normal(ks[1], (S, H), jnp.float32),
        'w_qkv': sd * jax.random.normal(ks[2], (H, 3 * H), jnp.float32),
        'b_qkv': jnp.zeros((1, 3 * H), jnp.float32),
        'wo': sd * jax.random.normal(ks[3], (H, H), jnp.float32),
        'bo': jnp.zeros((1, H), jnp.float32),
        'ln1_g': jnp.ones((1, H), jnp.float32),
        'ln1_b': jnp.zeros((1, H), jnp.float32),
        'w1': sd * jax.random.normal(ks[4], (H, FF), jnp.float32),
        'b1': jnp.zeros((1, FF), jnp.float32),
        'w2': sd * jax.random.normal(ks[5], (FF, H), jnp.float32),
        'b2': jnp.zeros((1, H), jnp.float32),
        'ln2_g': jnp.ones((1, H), jnp.float32),
        'ln2_b': jnp.zeros((1, H), jnp.float32),
        'cls_wd': sd * jax.random.normal(ks[6], (H, H), jnp.float32),
        'cls_bd': jnp.zeros((1, H), jnp.float32),
        'cls_wp': sd * jax.random.normal(ks[7], (H, NUM_LABELS), jnp.float32),
        'cls_bp': jnp.zeros((1, NUM_LABELS), jnp.float32),
    }


def _pad2(a, rows, cols):
    return jnp.pad(a, ((0, rows - a.shape[0]), (0, cols - a.shape[1])))


def pack_params(p):
    """Pack all parameters into 3 contiguous f32 slabs (done once, off the hot path)."""
    # classifier weights duplicated into lanes [0,2) and [2,4) of a 128-wide matrix
    wp_dup = jnp.zeros((H, OUT_W), jnp.float32)
    wp_dup = wp_dup.at[:, 0:NUM_LABELS].set(p['cls_wp'])
    wp_dup = wp_dup.at[:, NUM_LABELS:2 * NUM_LABELS].set(p['cls_wp'])
    bp_dup = jnp.zeros((1, OUT_W), jnp.float32)
    bp_dup = bp_dup.at[:, 0:NUM_LABELS].set(p['cls_bp'])
    bp_dup = bp_dup.at[:, NUM_LABELS:2 * NUM_LABELS].set(p['cls_bp'])

    slab_a = jnp.concatenate([
        _pad2(p['w_qkv'], H, 128), _pad2(p['w1'], H, 128), _pad2(p['wo'], H, 128),
        _pad2(p['cls_wd'], H, 128), wp_dup], axis=1)                  # (32, 640)

    slab_b = jnp.concatenate([
        _pad2(p['w2'], FF, 128), _pad2(p['tok_emb'], VOCAB_PAD, 128),
        _pad2(p['pos_emb'], S, 128)], axis=0)                         # (136, 128)

    bias_rows = [p['b_qkv'], p['bo'], p['ln1_g'], p['ln1_b'], p['b1'],
                 p['b2'], p['ln2_g'], p['ln2_b'], p['cls_bd'], bp_dup]
    bias = jnp.concatenate([_pad2(r, 1, 128) for r in bias_rows]
                           + [jnp.zeros((_BIAS_ROWS - len(bias_rows), 128), jnp.float32)],
                           axis=0)                                    # (16, 128)
    return {'slab_a': slab_a, 'slab_b': slab_b, 'bias': bias}


# --------------------------------- forward ---------------------------------
def model_forward(packed, input_ids, labels=None):
    # attention_mask = input_ids.ne(1)  (trivial wrapper glue, like the spec)
    mask = (input_ids != PAD_ID).astype(jnp.float32)          # (B, S)
    ids_flat = input_ids.astype(jnp.int32).reshape(B * S, 1)  # rows for one-hot embedding

    if labels is None:
        out = _infer_call(ids_flat, mask,
                          packed['slab_a'], packed['slab_b'], packed['bias'])
        return out[:, NUM_LABELS:2 * NUM_LABELS]               # prob
    labels_col = labels.astype(jnp.int32).reshape(B, 1)        # labels.long()
    out = _train_call(ids_flat, mask, labels_col,
                      packed['slab_a'], packed['slab_b'], packed['bias'])
    logits = out[:, 0:NUM_LABELS]
    loss = out[0, 2 * NUM_LABELS]
    return loss, logits


# ----------------------------------- main -----------------------------------
if __name__ == "__main__":
    key = jax.random.PRNGKey(0)
    kp, ki, kl = jax.random.split(key, 3)
    params = init_params(kp)
    packed = pack_params(params)

    input_ids = jax.random.randint(ki, (B, S), 0, VOCAB, dtype=jnp.int32)
    # introduce some padding tokens so attention_mask = input_ids.ne(1) matters
    input_ids = input_ids.at[:, -2:].set(PAD_ID)
    labels = jax.random.randint(kl, (B,), 0, NUM_LABELS, dtype=jnp.int32)

    infer = jax.jit(lambda p, ids: model_forward(p, ids))
    train = jax.jit(lambda p, ids, lab: model_forward(p, ids, lab))

    prob = infer(packed, input_ids)            # inference path -> prob
    loss, logits = train(packed, input_ids, labels)  # training path -> (loss, logits)
    jax.block_until_ready((prob, loss, logits))

    assert prob.shape == (B, NUM_LABELS)
    assert logits.shape == (B, NUM_LABELS)
    assert loss.shape == ()
    assert bool(jnp.all(jnp.isfinite(prob)))
    assert bool(jnp.all(jnp.isfinite(logits)))
    assert bool(jnp.isfinite(loss))
    # prob should equal softmax(logits) (exact divide in kernel)
    assert bool(jnp.allclose(prob, jax.nn.softmax(logits, axis=-1), atol=1e-4, rtol=1e-4))
    print("KERNEL_OK")
</pallas_src>

<mosaic_0001>
module attributes {stable_mosaic.version = 11 : i64} {
  func.func @kernel(%arg0: memref<16x1xi32, #tpu.memory_space<vmem>>, %arg1: memref<2x8xf32, #tpu.memory_space<vmem>>, %arg2: memref<32x640xf32, #tpu.memory_space<vmem>>, %arg3: memref<136x128xf32, #tpu.memory_space<vmem>>, %arg4: memref<16x128xf32, #tpu.memory_space<vmem>>, %arg5: memref<2x128xf32, #tpu.memory_space<vmem>>) attributes {dimension_semantics = [], scalar_prefetch = 0 : i64, scratch_operands = 0 : i64, tpu.core_type = #tpu.core_type<tc>} {
    %c0 = arith.constant 0 : index
    %c0_0 = arith.constant 0 : index
    %0 = vector.load %arg2[%c0, %c0_0] : memref<32x640xf32, #tpu.memory_space<vmem>>, vector<32x96xf32>
    %c0_1 = arith.constant 0 : index
    %c128 = arith.constant 128 : index
    %1 = vector.load %arg2[%c0_1, %c128] : memref<32x640xf32, #tpu.memory_space<vmem>>, vector<32x64xf32>
    %c0_2 = arith.constant 0 : index
    %c256 = arith.constant 256 : index
    %2 = vector.load %arg2[%c0_2, %c256] : memref<32x640xf32, #tpu.memory_space<vmem>>, vector<32x32xf32>
    %c0_3 = arith.constant 0 : index
    %c384 = arith.constant 384 : index
    %3 = vector.load %arg2[%c0_3, %c384] : memref<32x640xf32, #tpu.memory_space<vmem>>, vector<32x32xf32>
    %c0_4 = arith.constant 0 : index
    %c512 = arith.constant 512 : index
    %4 = vector.load %arg2[%c0_4, %c512] : memref<32x640xf32, #tpu.memory_space<vmem>>, vector<32x128xf32>
    %c0_5 = arith.constant 0 : index
    %c0_6 = arith.constant 0 : index
    %5 = vector.load %arg3[%c0_5, %c0_6] : memref<136x128xf32, #tpu.memory_space<vmem>>, vector<64x32xf32>
    %c64 = arith.constant 64 : index
    %c0_7 = arith.constant 0 : index
    %6 = vector.load %arg3[%c64, %c0_7] : memref<136x128xf32, #tpu.memory_space<vmem>>, vector<64x32xf32>
    %c128_8 = arith.constant 128 : index
    %c0_9 = arith.constant 0 : index
    %7 = vector.load %arg3[%c128_8, %c0_9] : memref<136x128xf32, #tpu.memory_space<vmem>>, vector<8x32xf32>
    %c0_10 = arith.constant 0 : index
    %c0_11 = arith.constant 0 : index
    %8 = vector.load %arg4[%c0_10, %c0_11] : memref<16x128xf32, #tpu.memory_space<vmem>>, vector<1x96xf32>
    %c1 = arith.constant 1 : index
    %c0_12 = arith.constant 0 : index
    %9 = vector.load %arg4[%c1, %c0_12] : memref<16x128xf32, #tpu.memory_space<vmem>>, vector<1x32xf32>
    %c2 = arith.constant 2 : index
    %c0_13 = arith.constant 0 : index
    %10 = vector.load %arg4[%c2, %c0_13] : memref<16x128xf32, #tpu.memory_space<vmem>>, vector<1x32xf32>
    %c3 = arith.constant 3 : index
    %c0_14 = arith.constant 0 : index
    %11 = vector.load %arg4[%c3, %c0_14] : memref<16x128xf32, #tpu.memory_space<vmem>>, vector<1x32xf32>
    %c4 = arith.constant 4 : index
    %c0_15 = arith.constant 0 : index
    %12 = vector.load %arg4[%c4, %c0_15] : memref<16x128xf32, #tpu.memory_space<vmem>>, vector<1x64xf32>
    %c5 = arith.constant 5 : index
    %c0_16 = arith.constant 0 : index
    %13 = vector.load %arg4[%c5, %c0_16] : memref<16x128xf32, #tpu.memory_space<vmem>>, vector<1x32xf32>
    %c6 = arith.constant 6 : index
    %c0_17 = arith.constant 0 : index
    %14 = vector.load %arg4[%c6, %c0_17] : memref<16x128xf32, #tpu.memory_space<vmem>>, vector<1x32xf32>
    %c7 = arith.constant 7 : index
    %c0_18 = arith.constant 0 : index
    %15 = vector.load %arg4[%c7, %c0_18] : memref<16x128xf32, #tpu.memory_space<vmem>>, vector<1x32xf32>
    %c8 = arith.constant 8 : index
    %c0_19 = arith.constant 0 : index
    %16 = vector.load %arg4[%c8, %c0_19] : memref<16x128xf32, #tpu.memory_space<vmem>>, vector<1x32xf32>
    %c9 = arith.constant 9 : index
    %c0_20 = arith.constant 0 : index
    %17 = vector.load %arg4[%c9, %c0_20] : memref<16x128xf32, #tpu.memory_space<vmem>>, vector<1x128xf32>
    %c0_21 = arith.constant 0 : index
    %c0_22 = arith.constant 0 : index
    %18 = vector.load %arg0[%c0_21, %c0_22] : memref<16x1xi32, #tpu.memory_space<vmem>>, vector<16x1xi32>
    %19 = tpu.iota {dimensions = array<i32: 1>} : vector<16x64xi32>
    %20 = vector.broadcast %18 : vector<16x1xi32> to vector<16x64xi32>
    %21 = arith.cmpi eq, %19, %20 : vector<16x64xi32>
    %22 = arith.extui %21 : vector<16x64xi1> to vector<16x64xi32>
    %23 = arith.sitofp %22 : vector<16x64xi32> to vector<16x64xf32>
    %cst = arith.constant dense<0.000000e+00> : vector<16x32xf32>
    %24 = tpu.matmul %23, %6, %cst {dimension_numbers = #tpu.dot_dimension_numbers<[1], [0], [0], [1], [0, 0, 1, 1], [], []>} : vector<16x64xf32>, vector<64x32xf32>, vector<16x32xf32> -> vector<16x32xf32>
    %25 = vector.shape_cast %24 : vector<16x32xf32> to vector<2x8x32xf32>
    %26 = vector.shape_cast %7 : vector<8x32xf32> to vector<1x8x32xf32>
    %27 = vector.broadcast %26 : vector<1x8x32xf32> to vector<2x8x32xf32>
    %28 = arith.addf %25, %27 : vector<2x8x32xf32>
    %29 = vector.extract_strided_slice %28 {offsets = [0, 0, 0], sizes = [2, 1, 32], strides = [1, 1, 1]} : vector<2x8x32xf32> to vector<2x1x32xf32>
    %30 = vector.shape_cast %29 : vector<2x1x32xf32> to vector<2x32xf32>
    %31 = vector.shape_cast %28 : vector<2x8x32xf32> to vector<16x32xf32>
    %cst_23 = arith.constant dense<0.000000e+00> : vector<16x96xf32>
    %32 = tpu.matmul %31, %0, %cst_23 {dimension_numbers = #tpu.dot_dimension_numbers<[1], [0], [0], [1], [0, 0, 1, 1], [], []>} : vector<16x32xf32>, vector<32x96xf32>, vector<16x96xf32> -> vector<16x96xf32>
    %33 = vector.broadcast %8 : vector<1x96xf32> to vector<16x96xf32>
    %34 = arith.addf %32, %33 : vector<16x96xf32>
    %35 = vector.shape_cast %34 : vector<16x96xf32> to vector<2x8x96xf32>
    %36 = vector.extract_strided_slice %35 {offsets = [0, 0, 0], sizes = [2, 1, 32], strides = [1, 1, 1]} : vector<2x8x96xf32> to vector<2x1x32xf32>
    %c0_24 = arith.constant 0 : index
    %c0_25 = arith.constant 0 : index
    %37 = vector.load %arg1[%c0_24, %c0_25] : memref<2x8xf32, #tpu.memory_space<vmem>>, vector<2x8xf32>
    %cst_26 = arith.constant 1.000000e+00 : f32
    %38 = vector.broadcast %cst_26 : f32 to vector<2x8xf32>
    %39 = arith.subf %37, %38 : vector<2x8xf32>
    %cst_27 = arith.constant 1.000000e+09 : f32
    %40 = vector.broadcast %cst_27 : f32 to vector<2x8xf32>
    %41 = arith.mulf %39, %40 : vector<2x8xf32>
    %42 = vector.shape_cast %41 : vector<2x8xf32> to vector<2x1x8xf32>
    %43 = vector.extract_strided_slice %36 {offsets = [0, 0, 0], sizes = [2, 1, 16], strides = [1, 1, 1]} : vector<2x1x32xf32> to vector<2x1x16xf32>
    %44 = vector.extract_strided_slice %35 {offsets = [0, 0, 32], sizes = [2, 8, 16], strides = [1, 1, 1]} : vector<2x8x96xf32> to vector<2x8x16xf32>
    %45 = vector.extract_strided_slice %35 {offsets = [0, 0, 64], sizes = [2, 8, 16], strides = [1, 1, 1]} : vector<2x8x96xf32> to vector<2x8x16xf32>
    "tpu.trace_start"() <{level = 10 : i32, message = "bqd,bkd->bqk"}> : () -> ()
    %cst_28 = arith.constant dense<0.000000e+00> : vector<2x1x8xf32>
    %46 = tpu.matmul %43, %44, %cst_28 {dimension_numbers = #tpu.dot_dimension_numbers<[2], [2], [1], [1], [0, 0, 0, 1, 1, 1], [0], [0]>} : vector<2x1x16xf32>, vector<2x8x16xf32>, vector<2x1x8xf32> -> vector<2x1x8xf32>
    "tpu.trace_stop"() : () -> ()
    %cst_29 = arith.constant 2.500000e-01 : f32
    %47 = vector.broadcast %cst_29 : f32 to vector<2x1x8xf32>
    %48 = arith.mulf %46, %47 : vector<2x1x8xf32>
    %49 = arith.addf %48, %42 : vector<2x1x8xf32>
    %cst_30 = arith.constant dense<0xFF800000> : vector<2x1xf32>
    %50 = vector.multi_reduction <maximumf>, %49, %cst_30 [2] : vector<2x1x8xf32> to vector<2x1xf32>
    %51 = vector.shape_cast %50 : vector<2x1xf32> to vector<2x1x1xf32>
    %52 = vector.broadcast %51 : vector<2x1x1xf32> to vector<2x1x8xf32>
    %53 = arith.subf %49, %52 : vector<2x1x8xf32>
    %54 = math.exp %53 : vector<2x1x8xf32>
    %cst_31 = arith.constant dense<0.000000e+00> : vector<2x1xf32>
    %55 = vector.multi_reduction <add>, %54, %cst_31 [2] : vector<2x1x8xf32> to vector<2x1xf32>
    %56 = vector.shape_cast %55 : vector<2x1xf32> to vector<2x1x1xf32>
    %57 = tpu.reciprocal %56 {approx = true} : vector<2x1x1xf32> -> vector<2x1x1xf32>
    %58 = vector.broadcast %57 : vector<2x1x1xf32> to vector<2x1x8xf32>
    %59 = arith.mulf %54, %58 : vector<2x1x8xf32>
    "tpu.trace_start"() <{level = 10 : i32, message = "bqk,bkd->bqd"}> : () -> ()
    %cst_32 = arith.constant dense<0.000000e+00> : vector<2x1x16xf32>
    %60 = tpu.matmul %59, %45, %cst_32 {dimension_numbers = #tpu.dot_dimension_numbers<[2], [1], [1], [2], [0, 0, 0, 1, 1, 2], [0], [0]>} : vector<2x1x8xf32>, vector<2x8x16xf32>, vector<2x1x16xf32> -> vector<2x1x16xf32>
    "tpu.trace_stop"() : () -> ()
    %61 = vector.extract_strided_slice %36 {offsets = [0, 0, 16], sizes = [2, 1, 16], strides = [1, 1, 1]} : vector<2x1x32xf32> to vector<2x1x16xf32>
    %62 = vector.extract_strided_slice %35 {offsets = [0, 0, 48], sizes = [2, 8, 16], strides = [1, 1, 1]} : vector<2x8x96xf32> to vector<2x8x16xf32>
    %63 = vector.extract_strided_slice %35 {offsets = [0, 0, 80], sizes = [2, 8, 16], strides = [1, 1, 1]} : vector<2x8x96xf32> to vector<2x8x16xf32>
    "tpu.trace_start"() <{level = 10 : i32, message = "bqd,bkd->bqk"}> : () -> ()
    %cst_33 = arith.constant dense<0.000000e+00> : vector<2x1x8xf32>
    %64 = tpu.matmul %61, %62, %cst_33 {dimension_numbers = #tpu.dot_dimension_numbers<[2], [2], [1], [1], [0, 0, 0, 1, 1, 1], [0], [0]>} : vector<2x1x16xf32>, vector<2x8x16xf32>, vector<2x1x8xf32> -> vector<2x1x8xf32>
    "tpu.trace_stop"() : () -> ()
    %cst_34 = arith.constant 2.500000e-01 : f32
    %65 = vector.broadcast %cst_34 : f32 to vector<2x1x8xf32>
    %66 = arith.mulf %64, %65 : vector<2x1x8xf32>
    %67 = arith.addf %66, %42 : vector<2x1x8xf32>
    %cst_35 = arith.constant dense<0xFF800000> : vector<2x1xf32>
    %68 = vector.multi_reduction <maximumf>, %67, %cst_35 [2] : vector<2x1x8xf32> to vector<2x1xf32>
    %69 = vector.shape_cast %68 : vector<2x1xf32> to vector<2x1x1xf32>
    %70 = vector.broadcast %69 : vector<2x1x1xf32> to vector<2x1x8xf32>
    %71 = arith.subf %67, %70 : vector<2x1x8xf32>
    %72 = math.exp %71 : vector<2x1x8xf32>
    %cst_36 = arith.constant dense<0.000000e+00> : vector<2x1xf32>
    %73 = vector.multi_reduction <add>, %72, %cst_36 [2] : vector<2x1x8xf32> to vector<2x1xf32>
    %74 = vector.shape_cast %73 : vector<2x1xf32> to vector<2x1x1xf32>
    %75 = tpu.reciprocal %74 {approx = true} : vector<2x1x1xf32> -> vector<2x1x1xf32>
    %76 = vector.broadcast %75 : vector<2x1x1xf32> to vector<2x1x8xf32>
    %77 = arith.mulf %72, %76 : vector<2x1x8xf32>
    "tpu.trace_start"() <{level = 10 : i32, message = "bqk,bkd->bqd"}> : () -> ()
    %cst_37 = arith.constant dense<0.000000e+00> : vector<2x1x16xf32>
    %78 = tpu.matmul %77, %63, %cst_37 {dimension_numbers = #tpu.dot_dimension_numbers<[2], [1], [1], [2], [0, 0, 0, 1, 1, 2], [0], [0]>} : vector<2x1x8xf32>, vector<2x8x16xf32>, vector<2x1x16xf32> -> vector<2x1x16xf32>
    "tpu.trace_stop"() : () -> ()
    %79 = tpu.concatenate %60, %78 in 2 : vector<2x1x16xf32>, vector<2x1x16xf32> -> vector<2x1x32xf32>
    %80 = vector.shape_cast %79 : vector<2x1x32xf32> to vector<2x32xf32>
    %cst_38 = arith.constant dense<0.000000e+00> : vector<2x32xf32>
    %81 = tpu.matmul %80, %2, %cst_38 {dimension_numbers = #tpu.dot_dimension_numbers<[1], [0], [0], [1], [0, 0, 1, 1], [], []>} : vector<2x32xf32>, vector<32x32xf32>, vector<2x32xf32> -> vector<2x32xf32>
    %82 = vector.broadcast %9 : vector<1x32xf32> to vector<2x32xf32>
    %83 = arith.addf %81, %82 : vector<2x32xf32>
    %84 = arith.addf %30, %83 : vector<2x32xf32>
    %cst_39 = arith.constant dense<0.000000e+00> : vector<2xf32>
    %85 = vector.multi_reduction <add>, %84, %cst_39 [1] : vector<2x32xf32> to vector<2xf32>
    %86 = vector.shape_cast %85 : vector<2xf32> to vector<2x1xf32>
    %cst_40 = arith.constant 3.200000e+01 : f32
    %87 = vector.broadcast %cst_40 : f32 to vector<2x1xf32>
    %88 = arith.divf %86, %87 : vector<2x1xf32>
    %89 = vector.broadcast %88 : vector<2x1xf32> to vector<2x32xf32>
    %90 = arith.subf %84, %89 : vector<2x32xf32>
    %91 = vector.broadcast %88 : vector<2x1xf32> to vector<2x32xf32>
    %92 = arith.subf %84, %91 : vector<2x32xf32>
    %93 = arith.mulf %90, %92 : vector<2x32xf32>
    %cst_41 = arith.constant dense<0.000000e+00> : vector<2xf32>
    %94 = vector.multi_reduction <add>, %93, %cst_41 [1] : vector<2x32xf32> to vector<2xf32>
    %95 = vector.shape_cast %94 : vector<2xf32> to vector<2x1xf32>
    %cst_42 = arith.constant 3.200000e+01 : f32
    %96 = vector.broadcast %cst_42 : f32 to vector<2x1xf32>
    %97 = arith.divf %95, %96 : vector<2x1xf32>
    %98 = vector.broadcast %88 : vector<2x1xf32> to vector<2x32xf32>
    %99 = arith.subf %84, %98 : vector<2x32xf32>
    %cst_43 = arith.constant 9.99999974E-6 : f32
    %100 = vector.broadcast %cst_43 : f32 to vector<2x1xf32>
    %101 = arith.addf %97, %100 : vector<2x1xf32>
    %102 = math.rsqrt %101 : vector<2x1xf32>
    %103 = vector.broadcast %102 : vector<2x1xf32> to vector<2x32xf32>
    %104 = arith.mulf %99, %103 : vector<2x32xf32>
    %105 = vector.broadcast %10 : vector<1x32xf32> to vector<2x32xf32>
    %106 = arith.mulf %104, %105 : vector<2x32xf32>
    %107 = vector.broadcast %11 : vector<1x32xf32> to vector<2x32xf32>
    %108 = arith.addf %106, %107 : vector<2x32xf32>
    %cst_44 = arith.constant dense<0.000000e+00> : vector<2x64xf32>
    %109 = tpu.matmul %108, %1, %cst_44 {dimension_numbers = #tpu.dot_dimension_numbers<[1], [0], [0], [1], [0, 0, 1, 1], [], []>} : vector<2x32xf32>, vector<32x64xf32>, vector<2x64xf32> -> vector<2x64xf32>
    %110 = vector.broadcast %12 : vector<1x64xf32> to vector<2x64xf32>
    %111 = arith.addf %109, %110 : vector<2x64xf32>
    %cst_45 = arith.constant 5.000000e-01 : f32
    %112 = vector.broadcast %cst_45 : f32 to vector<2x64xf32>
    %113 = arith.mulf %112, %111 : vector<2x64xf32>
    %cst_46 = arith.constant 4.471500e-02 : f32
    %114 = vector.broadcast %cst_46 : f32 to vector<2x64xf32>
    %115 = arith.mulf %114, %111 : vector<2x64xf32>
    %116 = arith.mulf %115, %111 : vector<2x64xf32>
    %117 = arith.mulf %116, %111 : vector<2x64xf32>
    %118 = arith.addf %111, %117 : vector<2x64xf32>
    %cst_47 = arith.constant 0.797884583 : f32
    %119 = vector.broadcast %cst_47 : f32 to vector<2x64xf32>
    %120 = arith.mulf %119, %118 : vector<2x64xf32>
    %121 = math.tanh %120 : vector<2x64xf32>
    %cst_48 = arith.constant 1.000000e+00 : f32
    %122 = vector.broadcast %cst_48 : f32 to vector<2x64xf32>
    %123 = arith.addf %122, %121 : vector<2x64xf32>
    %124 = arith.mulf %113, %123 : vector<2x64xf32>
    %cst_49 = arith.constant dense<0.000000e+00> : vector<2x32xf32>
    %125 = tpu.matmul %124, %5, %cst_49 {dimension_numbers = #tpu.dot_dimension_numbers<[1], [0], [0], [1], [0, 0, 1, 1], [], []>} : vector<2x64xf32>, vector<64x32xf32>, vector<2x32xf32> -> vector<2x32xf32>
    %126 = vector.broadcast %13 : vector<1x32xf32> to vector<2x32xf32>
    %127 = arith.addf %125, %126 : vector<2x32xf32>
    %128 = arith.addf %108, %127 : vector<2x32xf32>
    %cst_50 = arith.constant dense<0.000000e+00> : vector<2xf32>
    %129 = vector.multi_reduction <add>, %128, %cst_50 [1] : vector<2x32xf32> to vector<2xf32>
    %130 = vector.shape_cast %129 : vector<2xf32> to vector<2x1xf32>
    %cst_51 = arith.constant 3.200000e+01 : f32
    %131 = vector.broadcast %cst_51 : f32 to vector<2x1xf32>
    %132 = arith.divf %130, %131 : vector<2x1xf32>
    %133 = vector.broadcast %132 : vector<2x1xf32> to vector<2x32xf32>
    %134 = arith.subf %128, %133 : vector<2x32xf32>
    %135 = vector.broadcast %132 : vector<2x1xf32> to vector<2x32xf32>
    %136 = arith.subf %128, %135 : vector<2x32xf32>
    %137 = arith.mulf %134, %136 : vector<2x32xf32>
    %cst_52 = arith.constant dense<0.000000e+00> : vector<2xf32>
    %138 = vector.multi_reduction <add>, %137, %cst_52 [1] : vector<2x32xf32> to vector<2xf32>
    %139 = vector.shape_cast %138 : vector<2xf32> to vector<2x1xf32>
    %cst_53 = arith.constant 3.200000e+01 : f32
    %140 = vector.broadcast %cst_53 : f32 to vector<2x1xf32>
    %141 = arith.divf %139, %140 : vector<2x1xf32>
    %142 = vector.broadcast %132 : vector<2x1xf32> to vector<2x32xf32>
    %143 = arith.subf %128, %142 : vector<2x32xf32>
    %cst_54 = arith.constant 9.99999974E-6 : f32
    %144 = vector.broadcast %cst_54 : f32 to vector<2x1xf32>
    %145 = arith.addf %141, %144 : vector<2x1xf32>
    %146 = math.rsqrt %145 : vector<2x1xf32>
    %147 = vector.broadcast %146 : vector<2x1xf32> to vector<2x32xf32>
    %148 = arith.mulf %143, %147 : vector<2x32xf32>
    %149 = vector.broadcast %14 : vector<1x32xf32> to vector<2x32xf32>
    %150 = arith.mulf %148, %149 : vector<2x32xf32>
    %151 = vector.broadcast %15 : vector<1x32xf32> to vector<2x32xf32>
    %152 = arith.addf %150, %151 : vector<2x32xf32>
    %cst_55 = arith.constant dense<0.000000e+00> : vector<2x32xf32>
    %153 = tpu.matmul %152, %3, %cst_55 {dimension_numbers = #tpu.dot_dimension_numbers<[1], [0], [0], [1], [0, 0, 1, 1], [], []>} : vector<2x32xf32>, vector<32x32xf32>, vector<2x32xf32> -> vector<2x32xf32>
    %154 = vector.broadcast %16 : vector<1x32xf32> to vector<2x32xf32>
    %155 = arith.addf %153, %154 : vector<2x32xf32>
    %156 = math.tanh %155 : vector<2x32xf32>
    %cst_56 = arith.constant dense<0.000000e+00> : vector<2x128xf32>
    %157 = tpu.matmul %156, %4, %cst_56 {dimension_numbers = #tpu.dot_dimension_numbers<[1], [0], [0], [1], [0, 0, 1, 1], [], []>} : vector<2x32xf32>, vector<32x128xf32>, vector<2x128xf32> -> vector<2x128xf32>
    %158 = vector.broadcast %17 : vector<1x128xf32> to vector<2x128xf32>
    %159 = arith.addf %157, %158 : vector<2x128xf32>
    %160 = tpu.iota {dimensions = array<i32: 1>} : vector<2x128xi32>
    %c2_i32 = arith.constant 2 : i32
    %161 = vector.broadcast %c2_i32 : i32 to vector<2x128xi32>
    %162 = arith.cmpi sge, %160, %161 : vector<2x128xi32>
    %c4_i32 = arith.constant 4 : i32
    %163 = vector.broadcast %c4_i32 : i32 to vector<2x128xi32>
    %164 = arith.cmpi slt, %160, %163 : vector<2x128xi32>
    %165 = arith.andi %162, %164 : vector<2x128xi1>
    %cst_57 = arith.constant -1.000000e+30 : f32
    %166 = vector.broadcast %cst_57 : f32 to vector<2x128xf32>
    %167 = arith.select %165, %159, %166 : vector<2x128xi1>, vector<2x128xf32>
    %cst_58 = arith.constant dense<0xFF800000> : vector<2xf32>
    %168 = vector.multi_reduction <maximumf>, %167, %cst_58 [1] : vector<2x128xf32> to vector<2xf32>
    %169 = vector.shape_cast %168 : vector<2xf32> to vector<2x1xf32>
    %170 = vector.broadcast %169 : vector<2x1xf32> to vector<2x128xf32>
    %171 = arith.subf %167, %170 : vector<2x128xf32>
    %172 = math.exp %171 : vector<2x128xf32>
    %cst_59 = arith.constant dense<0.000000e+00> : vector<2xf32>
    %173 = vector.multi_reduction <add>, %172, %cst_59 [1] : vector<2x128xf32> to vector<2xf32>
    %174 = vector.shape_cast %173 : vector<2xf32> to vector<2x1xf32>
    %175 = vector.broadcast %174 : vector<2x1xf32> to vector<2x128xf32>
    %176 = arith.divf %172, %175 : vector<2x128xf32>
    %c2_i32_60 = arith.constant 2 : i32
    %177 = vector.broadcast %c2_i32_60 : i32 to vector<2x128xi32>
    %178 = arith.cmpi slt, %160, %177 : vector<2x128xi32>
    %cst_61 = arith.constant 0.000000e+00 : f32
    %179 = vector.broadcast %cst_61 : f32 to vector<2x128xf32>
    %180 = arith.select %178, %159, %179 : vector<2x128xi1>, vector<2x128xf32>
    %181 = arith.addf %180, %176 : vector<2x128xf32>
    %c0_62 = arith.constant 0 : index
    %c0_63 = arith.constant 0 : index
    %182 = vector.load %arg5[%c0_62, %c0_63] : memref<2x128xf32, #tpu.memory_space<vmem>>, vector<2x128xf32>
    tpu.vector_store %arg5[%c0_62, %c0_63], %181 {strides = array<i32>} : memref<2x128xf32, #tpu.memory_space<vmem>>, vector<2x128xf32>,
    return
  }
}

</mosaic_0001>

<llo_original>
// kernel: _lambda_.1
$region0: #{_lambda_.1}
  #allocation0 [shape = 'u32[]', space=smem, size = 0x4, offset = 0x4, fixed_abs, tag = 'smem constant byte address 0x4 - core index']
  #allocation1 [shape = 'u32[144,128]{1,0:T(1,128)}', space=vmem, size = 0x12000, scoped, tag = 'internal scratch']
  %s0 = inlined_call_operand.vmem [shape: s32[16,1], index: 0, kind: input, shape index: {}]
  %s1 = inlined_call_operand.vmem [shape: f32[2,8], index: 1, kind: input, shape index: {}]
  %s2 = inlined_call_operand.hbm [shape: f32[32,640], index: 2, kind: input, shape index: {}]
  %s3 = inlined_call_operand.hbm [shape: f32[136,128], index: 3, kind: input, shape index: {}]
  %s4 = inlined_call_operand.vmem [shape: f32[16,128], index: 4, kind: input, shape index: {}]
  %s5 = inlined_call_operand.vmem [shape: f32[2,128], index: 5, kind: output, shape index: {}]
  %s6 = sld [smem:[#allocation0]]
  $region38: #{_lambda_.1} parent=0
    _
  %s8 = ssub.s32 1, %s6
  %s9 = scalar_select 0, %s8, %s6
  $region1: #{_lambda_.1} parent=0
    #allocation2 [shape = 'u8[81920]{0}', space=vmem, size = 0x14000, scoped, tag = 'input window, operand 2, single buffered']
    #allocation3 [shape = 's32[1]{0}', space=sflag, size = 0x4, scoped, tag = 'scoped memory for _lambda_.1']
    #allocation4 [shape = 'u8[69632]{0}', space=vmem, size = 0x11000, scoped, tag = 'input window, operand 3, single buffered']
    #allocation5 [shape = 's32[1]{0}', space=sflag, size = 0x4, scoped, tag = 'scoped memory for _lambda_.1']
    %10 = vsyncpa [#allocation3], 0
    %11 = vsyncpa [#allocation5], 0
    // Predicated region
    $region2: #{_lambda_.1} parent=1 // pred_check
      _
    $region3: #{_lambda_.1} parent=1 // pred_check_branch
      %13 = sbr.rel (0) target = $region5
    $region4: #{_lambda_.1} parent=1 // pred_region
      _
    $region5: #{_lambda_.1} parent=1 // pred_fallthru
      _
    // Predicated region
    $region6: #{_lambda_.1} parent=1 // pred_check
      _
    $region7: #{_lambda_.1} parent=1 // pred_check_branch
      %15 = sbr.rel (0) target = $region9
    $region8: #{_lambda_.1} parent=1 // pred_region
      _
    $region9: #{_lambda_.1} parent=1 // pred_fallthru
      _
    // Predicated region
    $region10: #{_lambda_.1} parent=1 // pred_check
      _
    $region11: #{_lambda_.1} parent=1 // pred_check_branch
      %17 = sbr.rel (0) target = $region13
    $region12: #{_lambda_.1} parent=1 // pred_region
      %s19 = ssub.s32 2560, 2560
      %20 = vsyncadd [#allocation3], %s19
      %s21 = sshll.u32 [#allocation2], 4
      %s22 = int_to_ptr.vmem [resolvable:$true] %s21
      %27 = dma.hbm_to_vmem [thread:$0]  %s2, 2560, %s22, [#allocation3], 640, 640, 40
    $region13: #{_lambda_.1} parent=1 // pred_fallthru
      _
    // Predicated region
    $region14: #{_lambda_.1} parent=1 // pred_check
      _
    $region15: #{_lambda_.1} parent=1 // pred_check_branch
      %29 = sbr.rel (0) target = $region17
    $region16: #{_lambda_.1} parent=1 // pred_region
      %s31 = ssub.s32 2176, 2176
      %32 = vsyncadd [#allocation5], %s31
      %s33 = sshll.u32 [#allocation4], 4
      %s34 = int_to_ptr.vmem [resolvable:$true] %s33
      %39 = dma.hbm_to_vmem [thread:$0]  %s3, 2176, %s34, [#allocation5], 128, 128, 8
    $region17: #{_lambda_.1} parent=1 // pred_fallthru
      _
    // Predicated region
    $region18: #{_lambda_.1} parent=1 // pred_check
      _
    $region19: #{_lambda_.1} parent=1 // pred_check_branch
      %41 = sbr.rel (0) target = $region21
    $region20: #{_lambda_.1} parent=1 // pred_region
      _
    $region21: #{_lambda_.1} parent=1 // pred_fallthru
      _
    // Predicated region
    $region22: #{_lambda_.1} parent=1 // pred_check
      _
    $region23: #{_lambda_.1} parent=1 // pred_check_branch
      %43 = sbr.rel (0) target = $region25
    $region24: #{_lambda_.1} parent=1 // pred_region
      %44 = dma.done [#allocation3], 2560
    $region25: #{_lambda_.1} parent=1 // pred_fallthru
      _
    // Predicated region
    $region26: #{_lambda_.1} parent=1 // pred_check
      _
    $region27: #{_lambda_.1} parent=1 // pred_check_branch
      %46 = sbr.rel (0) target = $region29
    $region28: #{_lambda_.1} parent=1 // pred_region
      %47 = dma.done [#allocation5], 2176
    $region29: #{_lambda_.1} parent=1 // pred_fallthru
      _
    %v48 = vld [vmem:[#allocation2] sm:$0xff]
    %v49 = vld [vmem:[#allocation2 + $0x28] sm:$0xff]
    %v50 = vld [vmem:[#allocation2 + $0x50] sm:$0xff]
    %v51 = vld [vmem:[#allocation2 + $0x78] sm:$0xff]
    %v52 = vld [vmem:[#allocation2 + $0x8] sm:$0xff]
    %v53 = vld [vmem:[#allocation2 + $0x30] sm:$0xff]
    %v54 = vld [vmem:[#allocation2 + $0x58] sm:$0xff]
    %v55 = vld [vmem:[#allocation2 + $0x80] sm:$0xff]
    %v56 = vld [vmem:[#allocation2 + $0x10] sm:$0xff]
    %v57 = vld [vmem:[#allocation2 + $0x38] sm:$0xff]
    %v58 = vld [vmem:[#allocation2 + $0x60] sm:$0xff]
    %v59 = vld [vmem:[#allocation2 + $0x88] sm:$0xff]
    %v60 = vld [vmem:[#allocation2 + $0x18] sm:$0xff]
    %v61 = vld [vmem:[#allocation2 + $0x40] sm:$0xff]
    %v62 = vld [vmem:[#allocation2 + $0x68] sm:$0xff]
    %v63 = vld [vmem:[#allocation2 + $0x90] sm:$0xff]
    %v64 = vld [vmem:[#allocation2 + $0x20] sm:$0xff]
    %v65 = vld [vmem:[#allocation2 + $0x48] sm:$0xff]
    %v66 = vld [vmem:[#allocation2 + $0x70] sm:$0xff]
    %v67 = vld [vmem:[#allocation2 + $0x98] sm:$0xff]
    %v68 = vld [vmem:[#allocation4] sm:$0xff]
    %v69 = vld [vmem:[#allocation4 + $0x8] sm:$0xff]
    %v70 = vld [vmem:[#allocation4 + $0x10] sm:$0xff]
    %v71 = vld [vmem:[#allocation4 + $0x18] sm:$0xff]
    %v72 = vld [vmem:[#allocation4 + $0x20] sm:$0xff]
    %v73 = vld [vmem:[#allocation4 + $0x28] sm:$0xff]
    %v74 = vld [vmem:[#allocation4 + $0x30] sm:$0xff]
    %v75 = vld [vmem:[#allocation4 + $0x38] sm:$0xff]
    %v76 = vld [vmem:[#allocation4 + $0x40] sm:$0xff]
    %v77 = vld [vmem:[#allocation4 + $0x48] sm:$0xff]
    %v78 = vld [vmem:[#allocation4 + $0x50] sm:$0xff]
    %v79 = vld [vmem:[#allocation4 + $0x58] sm:$0xff]
    %v80 = vld [vmem:[#allocation4 + $0x60] sm:$0xff]
    %v81 = vld [vmem:[#allocation4 + $0x68] sm:$0xff]
    %v82 = vld [vmem:[#allocation4 + $0x70] sm:$0xff]
    %v83 = vld [vmem:[#allocation4 + $0x78] sm:$0xff]
    %v84 = vld [vmem:[#allocation4 + $0x80] sm:$0xff]
    %v85 = vld [vmem:[%s4] sm:$0x1]
    %v86 = vld [vmem:[%s4 + $0x1] sm:$0x1]
    %v87 = vld [vmem:[%s4 + $0x2] sm:$0x1]
    %v88 = vld [vmem:[%s4 + $0x3] sm:$0x1]
    %v89 = vld [vmem:[%s4 + $0x4] sm:$0x1]
    %v90 = vld [vmem:[%s4 + $0x5] sm:$0x1]
    %v91 = vld [vmem:[%s4 + $0x6] sm:$0x1]
    %v92 = vld [vmem:[%s4 + $0x7] sm:$0x1]
    %v93 = vld [vmem:[%s4 + $0x8] sm:$0x1]
    %v94 = vld [vmem:[%s4 + $0x9] sm:$0x1]
    %v95 = vld [vmem:[%s0] sm:$0xff]
    %v96 = vld [vmem:[%s0 + $0x8] sm:$0xff]
    %v97 = vlaneseq
    %v98 = vand.u32 %v97, 127
    %99 = vset.pattern.permute.xlu0 0
    %100 = vperm.xlu0 %99, %v95
    %v101 = vpop.permute.xlu0 %100
    %102 = vset.pattern.permute.xlu0 0
    %103 = vperm.xlu0 %102, %v96
    %v104 = vpop.permute.xlu0 %103
    %vm105 = vcmp.eq.s32.totalorder %v98, %v101
    %vm106 = vcmp.eq.s32.totalorder %v98, %v104
    %v107 = vsel %vm105, 1, 0
    %v108 = vsel %vm106, 1, 0
    %v109 = vcvt.s32.f32 %v107
    %v110 = vcvt.s32.f32 %v108
    %vm111 = vcmask 523264
    %v113 = vsel %vm111, %v109, 0
    %v116 = vsel %vm111, %v110, 0
    %118 = vmatprep.subr.mxu0 0.0
    %119 = vmatpush1.msra.mxu0 %v76
    %120 = vmatprep.subr.mxu0 0.0
    %121 = vmatpush1.msra.mxu0 %v77
    %122 = vmatprep.subr.mxu0 0.0
    %123 = vmatpush1.msra.mxu0 %v78
    %124 = vmatprep.subr.mxu0 0.0
    %125 = vmatpush1.msra.mxu0 %v79
    %126 = vmatprep.subr.mxu0 0.0
    %127 = vmatpush1.msra.mxu0 %v80
    %128 = vmatprep.subr.mxu0 0.0
    %129 = vmatpush1.msra.mxu0 %v81
    %130 = vmatprep.subr.mxu0 0.0
    %131 = vmatpush1.msra.mxu0 %v82
    %132 = vmatprep.subr.mxu0 0.0
    %133 = vmatpush1.msra.mxu0 %v83
    %134 = vmatprep.subr.mxu0 0.0
    %135 = vmatpush1.msra.mxu0 0.0
    %136 = vmatprep.subr.mxu0 0.0
    %137 = vmatpush1.msra.mxu0 0.0
    %138 = vmatprep.subr.mxu0 0.0
    %139 = vmatpush1.msra.mxu0 0.0
    %140 = vmatprep.subr.mxu0 0.0
    %141 = vmatpush1.msra.mxu0 0.0
    %142 = vmatprep.subr.mxu0 0.0
    %143 = vmatpush1.msra.mxu0 0.0
    %144 = vmatprep.subr.mxu0 0.0
    %145 = vmatpush1.msra.mxu0 0.0
    %146 = vmatprep.subr.mxu0 0.0
    %147 = vmatpush1.msra.mxu0 0.0
    %148 = vmatprep.subr.mxu0 0.0
    %149 = vmatpush1.msra.mxu0 0.0
    %150 = vmatprep.subr.mxu0 0.0
    %151 = vmatpush1.msra.mxu0 0.0
    %152 = vmatprep.subr.mxu0 0.0
    %153 = vmatpush1.msra.mxu0 0.0
    %154 = vmatprep.subr.mxu0 0.0
    %155 = vmatpush1.msra.mxu0 0.0
    %156 = vmatprep.subr.mxu0 0.0
    %157 = vmatpush1.msra.mxu0 0.0
    %158 = vmatprep.subr.mxu0 0.0
    %159 = vmatpush1.msra.mxu0 0.0
    %160 = vmatprep.subr.mxu0 0.0
    %161 = vmatpush1.msra.mxu0 0.0
    %162 = vmatprep.subr.mxu0 0.0
    %163 = vmatpush1.msra.mxu0 0.0
    %164 = vmatprep.subr.mxu0 0.0
    %165 = vmatpush1.msra.mxu0 0.0
    %166 = vmatprep.subr.mxu0 0.0
    %167 = vmatpush1.msra.mxu0 0.0
    %168 = vmatprep.subr.mxu0 0.0
    %169 = vmatpush1.msra.mxu0 0.0
    %170 = vmatprep.subr.mxu0 0.0
    %171 = vmatpush1.msra.mxu0 0.0
    %172 = vmatprep.subr.mxu0 0.0
    %173 = vmatpush1.msra.mxu0 0.0
    %174 = vmatprep.subr.mxu0 0.0
    %175 = vmatpush1.msra.mxu0 0.0
    %176 = vmatprep.subr.mxu0 0.0
    %177 = vmatpush1.msra.mxu0 0.0
    %178 = vmatprep.subr.mxu0 0.0
    %179 = vmatpush1.msra.mxu0 0.0
    %180 = vmatprep.subr.mxu0 0.0
    %181 = vmatpush1.msra.mxu0 0.0
    %182 = vmatprep.mubr.f32.mxu0 0.0
    %183 = vmatmul.mubr.f32.gmra.mrb[0].mxu0 %v113
    %v184 = vpop.f32.mrb[0].mxu0
    %v185 = vadd.f32 0.0, %v184
    %v186 = vpop.f32.mrb[0].mxu0
    %187 = vmatprep.mubr.f32.mxu0 0.0
    %188 = vmatmul.mubr.f32.gmra.mrb[0].mxu0 %v116
    %v189 = vpop.f32.mrb[0].mxu0
    %v190 = vadd.f32 0.0, %v189
    %v191 = vpop.f32.mrb[0].mxu0
    %192 = vdwg.mxu0
    %v193 = vadd.f32 %v185, %v84
    %v194 = vadd.f32 %v190, %v84
    %v195 = vlaneseq
    %v196 = vshrl.u32 %v195, 7
    %v197 = vsub.s32 0, %v196
    %v198 = vrot.slane %v85, %v197
    %vm199 = vcmask 261120
    %v201 = vsel %vm199, %v193, 0
    %v204 = vsel %vm199, %v194, 0
    %206 = vmatprep.subr.mxu0 0.0
    %207 = vmatpush1.msra.mxu0 %v48
    %208 = vmatprep.subr.mxu0 0.0
    %209 = vmatpush1.msra.mxu0 %v49
    %210 = vmatprep.subr.mxu0 0.0
    %211 = vmatpush1.msra.mxu0 %v50
    %212 = vmatprep.subr.mxu0 0.0
    %213 = vmatpush1.msra.mxu0 %v51
    %214 = vmatprep.subr.mxu0 0.0
    %215 = vmatpush1.msra.mxu0 0.0
    %216 = vmatprep.subr.mxu0 0.0
    %217 = vmatpush1.msra.mxu0 0.0
    %218 = vmatprep.subr.mxu0 0.0
    %219 = vmatpush1.msra.mxu0 0.0
    %220 = vmatprep.subr.mxu0 0.0
    %221 = vmatpush1.msra.mxu0 0.0
    %222 = vmatprep.subr.mxu0 0.0
    %223 = vmatpush1.msra.mxu0 0.0
    %224 = vmatprep.subr.mxu0 0.0
    %225 = vmatpush1.msra.mxu0 0.0
    %226 = vmatprep.subr.mxu0 0.0
    %227 = vmatpush1.msra.mxu0 0.0
    %228 = vmatprep.subr.mxu0 0.0
    %229 = vmatpush1.msra.mxu0 0.0
    %230 = vmatprep.subr.mxu0 0.0
    %231 = vmatpush1.msra.mxu0 0.0
    %232 = vmatprep.subr.mxu0 0.0
    %233 = vmatpush1.msra.mxu0 0.0
    %234 = vmatprep.subr.mxu0 0.0
    %235 = vmatpush1.msra.mxu0 0.0
    %236 = vmatprep.subr.mxu0 0.0
    %237 = vmatpush1.msra.mxu0 0.0
    %238 = vmatprep.subr.mxu0 0.0
    %239 = vmatpush1.msra.mxu0 0.0
    %240 = vmatprep.subr.mxu0 0.0
    %241 = vmatpush1.msra.mxu0 0.0
    %242 = vmatprep.subr.mxu0 0.0
    %243 = vmatpush1.msra.mxu0 0.0
    %244 = vmatprep.subr.mxu0 0.0
    %245 = vmatpush1.msra.mxu0 0.0
    %246 = vmatprep.subr.mxu0 0.0
    %247 = vmatpush1.msra.mxu0 0.0
    %248 = vmatprep.subr.mxu0 0.0
    %249 = vmatpush1.msra.mxu0 0.0
    %250 = vmatprep.subr.mxu0 0.0
    %251 = vmatpush1.msra.mxu0 0.0
    %252 = vmatprep.subr.mxu0 0.0
    %253 = vmatpush1.msra.mxu0 0.0
    %254 = vmatprep.subr.mxu0 0.0
    %255 = vmatpush1.msra.mxu0 0.0
    %256 = vmatprep.subr.mxu0 0.0
    %257 = vmatpush1.msra.mxu0 0.0
    %258 = vmatprep.subr.mxu0 0.0
    %259 = vmatpush1.msra.mxu0 0.0
    %260 = vmatprep.subr.mxu0 0.0
    %261 = vmatpush1.msra.mxu0 0.0
    %262 = vmatprep.subr.mxu0 0.0
    %263 = vmatpush1.msra.mxu0 0.0
    %264 = vmatprep.subr.mxu0 0.0
    %265 = vmatpush1.msra.mxu0 0.0
    %266 = vmatprep.subr.mxu0 0.0
    %267 = vmatpush1.msra.mxu0 0.0
    %268 = vmatprep.subr.mxu0 0.0
    %269 = vmatpush1.msra.mxu0 0.0
    %270 = vmatprep.mubr.f32.mxu0 0.0
    %271 = vmatmul.mubr.f32.gmra.mrb[0].mxu0 %v201
    %v272 = vpop.f32.mrb[0].mxu0
    %v273 = vadd.f32 %v198, %v272
    %v274 = vpop.f32.mrb[0].mxu0
    %275 = vmatprep.mubr.f32.mxu0 0.0
    %276 = vmatmul.mubr.f32.gmra.mrb[0].mxu0 %v204
    %v277 = vpop.f32.mrb[0].mxu0
    %v278 = vadd.f32 %v198, %v277
    %v279 = vpop.f32.mrb[0].mxu0
    %280 = vdwg.mxu0
    %v281 = vld [vmem:[%s1] sm:$0x3]
    %v282 = vsub.f32 %v281, 1.0
    %v283 = vmul.f32 %v282, 1e+09
    %v286 = vunpack.c.l.s4 1966171168
    %v287 = vunpack.c.0.s8 %v286
    %v288 = vlaneseq
    %v289 = vshrl.u32 %v288, 7
    %v290 = vsub.s32 %v287, %v289
    %v291 = vrot.slane %v283, %v290
    %v292 = vcombine.high %v291, %v291
    %v294 = vunpack.c.l.s4 1966171168
    %v295 = vunpack.c.0.s8 %v294
    %v296 = vlaneseq
    %v297 = vshrl.u32 %v296, 7
    %v298 = vsub.s32 %v295, %v297
    %v299 = vrot.slane %v291, %v298
    %v301 = vunpack.c.l.s4 1966171168
    %v302 = vunpack.c.0.s8 %v301
    %v303 = vlaneseq
    %v304 = vshrl.u32 %v303, 7
    %v305 = vsub.s32 %v302, %v304
    %v306 = vrot.slane %v292, %v305
    %310 = vrot.lane.b32.xlu0 %v273, 96
    %v311 = vpop.permute.xlu0 %310
    %vm312 = vcmask 130048
    %v313 = vsel %vm312, %v273, 0
    %v315 = vsel %vm312, %v311, 0
    %317 = vmatprep.subr.mxu0 0.0
    %318 = vmatpush1.xpose.msra.mxu0 %v315
    %319 = vmatprep.subr.mxu0 0.0
    %320 = vmatpush1.xpose.msra.mxu0 0.0
    %321 = vmatprep.subr.mxu0 0.0
    %322 = vmatpush1.xpose.msra.mxu0 0.0
    %323 = vmatprep.subr.mxu0 0.0
    %324 = vmatpush1.xpose.msra.mxu0 0.0
    %325 = vmatprep.subr.mxu0 0.0
    %326 = vmatpush1.xpose.msra.mxu0 0.0
    %327 = vmatprep.subr.mxu0 0.0
    %328 = vmatpush1.xpose.msra.mxu0 0.0
    %329 = vmatprep.subr.mxu0 0.0
    %330 = vmatpush1.xpose.msra.mxu0 0.0
    %331 = vmatprep.subr.mxu0 0.0
    %332 = vmatpush1.xpose.msra.mxu0 0.0
    %333 = vmatprep.subr.mxu0 0.0
    %334 = vmatpush1.xpose.msra.mxu0 0.0
    %335 = vmatprep.subr.mxu0 0.0
    %336 = vmatpush1.xpose.msra.mxu0 0.0
    %337 = vmatprep.subr.mxu0 0.0
    %338 = vmatpush1.xpose.msra.mxu0 0.0
    %339 = vmatprep.subr.mxu0 0.0
    %340 = vmatpush1.xpose.msra.mxu0 0.0
    %341 = vmatprep.subr.mxu0 0.0
    %342 = vmatpush1.xpose.msra.mxu0 0.0
    %343 = vmatprep.subr.mxu0 0.0
    %344 = vmatpush1.xpose.msra.mxu0 0.0
    %345 = vmatprep.subr.mxu0 0.0
    %346 = vmatpush1.xpose.msra.mxu0 0.0
    %347 = vmatprep.subr.mxu0 0.0
    %348 = vmatpush1.xpose.msra.mxu0 0.0
    %349 = vmatprep.subr.mxu0 0.0
    %350 = vmatpush1.xpose.msra.mxu0 0.0
    %351 = vmatprep.subr.mxu0 0.0
    %352 = vmatpush1.xpose.msra.mxu0 0.0
    %353 = vmatprep.subr.mxu0 0.0
    %354 = vmatpush1.xpose.msra.mxu0 0.0
    %355 = vmatprep.subr.mxu0 0.0
    %356 = vmatpush1.xpose.msra.mxu0 0.0
    %357 = vmatprep.subr.mxu0 0.0
    %358 = vmatpush1.xpose.msra.mxu0 0.0
    %359 = vmatprep.subr.mxu0 0.0
    %360 = vmatpush1.xpose.msra.mxu0 0.0
    %361 = vmatprep.subr.mxu0 0.0
    %362 = vmatpush1.xpose.msra.mxu0 0.0
    %363 = vmatprep.subr.mxu0 0.0
    %364 = vmatpush1.xpose.msra.mxu0 0.0
    %365 = vmatprep.subr.mxu0 0.0
    %366 = vmatpush1.xpose.msra.mxu0 0.0
    %367 = vmatprep.subr.mxu0 0.0
    %368 = vmatpush1.xpose.msra.mxu0 0.0
    %369 = vmatprep.subr.mxu0 0.0
    %370 = vmatpush1.xpose.msra.mxu0 0.0
    %371 = vmatprep.subr.mxu0 0.0
    %372 = vmatpush1.xpose.msra.mxu0 0.0
    %373 = vmatprep.subr.mxu0 0.0
    %374 = vmatpush1.xpose.msra.mxu0 0.0
    %375 = vmatprep.subr.mxu0 0.0
    %376 = vmatpush1.xpose.msra.mxu0 0.0
    %377 = vmatprep.subr.mxu0 0.0
    %378 = vmatpush1.xpose.msra.mxu0 0.0
    %379 = vmatprep.subr.mxu0 0.0
    %380 = vmatpush1.xpose.msra.mxu0 0.0
    %381 = vmatprep.mubr.f32.mxu0 0.0
    %382 = vmatmul.mubr.f32.gmra.mrb[0].mxu0 %v313
    %v383 = vpop.f32.mrb[0].mxu0
    %v384 = vadd.f32 0.0, %v383
    %v385 = vpop.f32.mrb[0].mxu0
    %386 = vdwg.mxu0
    %388 = vrot.lane.b32.xlu0 %v278, 96
    %v389 = vpop.permute.xlu0 %388
    %v390 = vsel %vm312, %v278, 0
    %v392 = vsel %vm312, %v389, 0
    %394 = vmatprep.subr.mxu0 0.0
    %395 = vmatpush1.xpose.msra.mxu0 %v392
    %396 = vmatprep.subr.mxu0 0.0
    %397 = vmatpush1.xpose.msra.mxu0 0.0
    %398 = vmatprep.subr.mxu0 0.0
    %399 = vmatpush1.xpose.msra.mxu0 0.0
    %400 = vmatprep.subr.mxu0 0.0
    %401 = vmatpush1.xpose.msra.mxu0 0.0
    %402 = vmatprep.subr.mxu0 0.0
    %403 = vmatpush1.xpose.msra.mxu0 0.0
    %404 = vmatprep.subr.mxu0 0.0
    %405 = vmatpush1.xpose.msra.mxu0 0.0
    %406 = vmatprep.subr.mxu0 0.0
    %407 = vmatpush1.xpose.msra.mxu0 0.0
    %408 = vmatprep.subr.mxu0 0.0
    %409 = vmatpush1.xpose.msra.mxu0 0.0
    %410 = vmatprep.subr.mxu0 0.0
    %411 = vmatpush1.xpose.msra.mxu0 0.0
    %412 = vmatprep.subr.mxu0 0.0
    %413 = vmatpush1.xpose.msra.mxu0 0.0
    %414 = vmatprep.subr.mxu0 0.0
    %415 = vmatpush1.xpose.msra.mxu0 0.0
    %416 = vmatprep.subr.mxu0 0.0
    %417 = vmatpush1.xpose.msra.mxu0 0.0
    %418 = vmatprep.subr.mxu0 0.0
    %419 = vmatpush1.xpose.msra.mxu0 0.0
    %420 = vmatprep.subr.mxu0 0.0
    %421 = vmatpush1.xpose.msra.mxu0 0.0
    %422 = vmatprep.subr.mxu0 0.0
    %423 = vmatpush1.xpose.msra.mxu0 0.0
    %424 = vmatprep.subr.mxu0 0.0
    %425 = vmatpush1.xpose.msra.mxu0 0.0
    %426 = vmatprep.subr.mxu0 0.0
    %427 = vmatpush1.xpose.msra.mxu0 0.0
    %428 = vmatprep.subr.mxu0 0.0
    %429 = vmatpush1.xpose.msra.mxu0 0.0
    %430 = vmatprep.subr.mxu0 0.0
    %431 = vmatpush1.xpose.msra.mxu0 0.0
    %432 = vmatprep.subr.mxu0 0.0
    %433 = vmatpush1.xpose.msra.mxu0 0.0
    %434 = vmatprep.subr.mxu0 0.0
    %435 = vmatpush1.xpose.msra.mxu0 0.0
    %436 = vmatprep.subr.mxu0 0.0
    %437 = vmatpush1.xpose.msra.mxu0 0.0
    %438 = vmatprep.subr.mxu0 0.0
    %439 = vmatpush1.xpose.msra.mxu0 0.0
    %440 = vmatprep.subr.mxu0 0.0
    %441 = vmatpush1.xpose.msra.mxu0 0.0
    %442 = vmatprep.subr.mxu0 0.0
    %443 = vmatpush1.xpose.msra.mxu0 0.0
    %444 = vmatprep.subr.mxu0 0.0
    %445 = vmatpush1.xpose.msra.mxu0 0.0
    %446 = vmatprep.subr.mxu0 0.0
    %447 = vmatpush1.xpose.msra.mxu0 0.0
    %448 = vmatprep.subr.mxu0 0.0
    %449 = vmatpush1.xpose.msra.mxu0 0.0
    %450 = vmatprep.subr.mxu0 0.0
    %451 = vmatpush1.xpose.msra.mxu0 0.0
    %452 = vmatprep.subr.mxu0 0.0
    %453 = vmatpush1.xpose.msra.mxu0 0.0
    %454 = vmatprep.subr.mxu0 0.0
    %455 = vmatpush1.xpose.msra.mxu0 0.0
    %456 = vmatprep.subr.mxu0 0.0
    %457 = vmatpush1.xpose.msra.mxu0 0.0
    %458 = vmatprep.mubr.f32.mxu0 0.0
    %459 = vmatmul.mubr.f32.gmra.mrb[0].mxu0 %v390
    %v460 = vpop.f32.mrb[0].mxu0
    %v461 = vadd.f32 0.0, %v460
    %v462 = vpop.f32.mrb[0].mxu0
    %463 = vdwg.mxu0
    %v464 = vmul.f32 %v384, 0.25
    %v465 = vmul.f32 %v461, 0.25
    %v466 = vadd.f32 %v464, %v299
    %v467 = vadd.f32 %v465, %v306
    %vm468 = vcmask 57344
    %v469 = vsel %vm468, %v466, -inf
    %470 = vmax.xlane.f32.xlu0 %v469
    %v471 = vpop.xlane.xlu0 %470
    %v472 = vsel %vm468, %v467, -inf
    %473 = vmax.xlane.f32.xlu0 %v472
    %v474 = vpop.xlane.xlu0 %473
    %v475 = vsub.f32 %v466, %v471
    %v476 = vsub.f32 %v467, %v474
    %v477 = vmul.f32 %v475, 1.442695
    %v478 = vpow.pop %v477
    %v479 = vmul.f32 %v476, 1.442695
    %v480 = vpow.pop %v479
    %v481 = vsel %vm468, %v478, 0.0
    %482 = vadd.xlane.f32.xlu0 %v481
    %v483 = vpop.xlane.xlu0 %482
    %v484 = vsel %vm468, %v480, 0.0
    %485 = vadd.xlane.f32.xlu0 %v484
    %v486 = vpop.xlane.xlu0 %485
    %v487 = vrcp.pop %v483
    %v488 = vrcp.pop %v486
    %v489 = vmul.f32 %v478, %v487
    %v490 = vmul.f32 %v480, %v488
    %491 = vrot.lane.b32.xlu0 %v273, 64
    %v492 = vpop.permute.xlu0 %491
    %vm494 = vcmask 64512
    %v496 = vsel %vm494, %v489, 0
    %498 = vmatprep.subr.mxu0 0.0
    %499 = vmatpush1.msra.mxu0 %v492
    %500 = vmatprep.subr.mxu0 0.0
    %501 = vmatpush1.msra.mxu0 0.0
    %502 = vmatprep.subr.mxu0 0.0
    %503 = vmatpush1.msra.mxu0 0.0
    %504 = vmatprep.subr.mxu0 0.0
    %505 = vmatpush1.msra.mxu0 0.0
    %506 = vmatprep.subr.mxu0 0.0
    %507 = vmatpush1.msra.mxu0 0.0
    %508 = vmatprep.subr.mxu0 0.0
    %509 = vmatpush1.msra.mxu0 0.0
    %510 = vmatprep.subr.mxu0 0.0
    %511 = vmatpush1.msra.mxu0 0.0
    %512 = vmatprep.subr.mxu0 0.0
    %513 = vmatpush1.msra.mxu0 0.0
    %514 = vmatprep.subr.mxu0 0.0
    %515 = vmatpush1.msra.mxu0 0.0
    %516 = vmatprep.subr.mxu0 0.0
    %517 = vmatpush1.msra.mxu0 0.0
    %518 = vmatprep.subr.mxu0 0.0
    %519 = vmatpush1.msra.mxu0 0.0
    %520 = vmatprep.subr.mxu0 0.0
    %521 = vmatpush1.msra.mxu0 0.0
    %522 = vmatprep.subr.mxu0 0.0
    %523 = vmatpush1.msra.mxu0 0.0
    %524 = vmatprep.subr.mxu0 0.0
    %525 = vmatpush1.msra.mxu0 0.0
    %526 = vmatprep.subr.mxu0 0.0
    %527 = vmatpush1.msra.mxu0 0.0
    %528 = vmatprep.subr.mxu0 0.0
    %529 = vmatpush1.msra.mxu0 0.0
    %530 = vmatprep.subr.mxu0 0.0
    %531 = vmatpush1.msra.mxu0 0.0
    %532 = vmatprep.subr.mxu0 0.0
    %533 = vmatpush1.msra.mxu0 0.0
    %534 = vmatprep.subr.mxu0 0.0
    %535 = vmatpush1.msra.mxu0 0.0
    %536 = vmatprep.subr.mxu0 0.0
    %537 = vmatpush1.msra.mxu0 0.0
    %538 = vmatprep.subr.mxu0 0.0
    %539 = vmatpush1.msra.mxu0 0.0
    %540 = vmatprep.subr.mxu0 0.0
    %541 = vmatpush1.msra.mxu0 0.0
    %542 = vmatprep.subr.mxu0 0.0
    %543 = vmatpush1.msra.mxu0 0.0
    %544 = vmatprep.subr.mxu0 0.0
    %545 = vmatpush1.msra.mxu0 0.0
    %546 = vmatprep.subr.mxu0 0.0
    %547 = vmatpush1.msra.mxu0 0.0
    %548 = vmatprep.subr.mxu0 0.0
    %549 = vmatpush1.msra.mxu0 0.0
    %550 = vmatprep.subr.mxu0 0.0
    %551 = vmatpush1.msra.mxu0 0.0
    %552 = vmatprep.subr.mxu0 0.0
    %553 = vmatpush1.msra.mxu0 0.0
    %554 = vmatprep.subr.mxu0 0.0
    %555 = vmatpush1.msra.mxu0 0.0
    %556 = vmatprep.subr.mxu0 0.0
    %557 = vmatpush1.msra.mxu0 0.0
    %558 = vmatprep.subr.mxu0 0.0
    %559 = vmatpush1.msra.mxu0 0.0
    %560 = vmatprep.subr.mxu0 0.0
    %561 = vmatpush1.msra.mxu0 0.0
    %562 = vmatprep.mubr.f32.mxu0 0.0
    %563 = vmatmul.mubr.f32.gmra.mrb[0].mxu0 %v496
    %v564 = vpop.f32.mrb[0].mxu0
    %v565 = vadd.f32 0.0, %v564
    %v566 = vpop.f32.mrb[0].mxu0
    %567 = vdwg.mxu0
    %568 = vrot.lane.b32.xlu0 %v278, 64
    %v569 = vpop.permute.xlu0 %568
    %v572 = vsel %vm494, %v490, 0
    %574 = vmatprep.subr.mxu0 0.0
    %575 = vmatpush1.msra.mxu0 %v569
    %576 = vmatprep.subr.mxu0 0.0
    %577 = vmatpush1.msra.mxu0 0.0
    %578 = vmatprep.subr.mxu0 0.0
    %579 = vmatpush1.msra.mxu0 0.0
    %580 = vmatprep.subr.mxu0 0.0
    %581 = vmatpush1.msra.mxu0 0.0
    %582 = vmatprep.subr.mxu0 0.0
    %583 = vmatpush1.msra.mxu0 0.0
    %584 = vmatprep.subr.mxu0 0.0
    %585 = vmatpush1.msra.mxu0 0.0
    %586 = vmatprep.subr.mxu0 0.0
    %587 = vmatpush1.msra.mxu0 0.0
    %588 = vmatprep.subr.mxu0 0.0
    %589 = vmatpush1.msra.mxu0 0.0
    %590 = vmatprep.subr.mxu0 0.0
    %591 = vmatpush1.msra.mxu0 0.0
    %592 = vmatprep.subr.mxu0 0.0
    %593 = vmatpush1.msra.mxu0 0.0
    %594 = vmatprep.subr.mxu0 0.0
    %595 = vmatpush1.msra.mxu0 0.0
    %596 = vmatprep.subr.mxu0 0.0
    %597 = vmatpush1.msra.mxu0 0.0
    %598 = vmatprep.subr.mxu0 0.0
    %599 = vmatpush1.msra.mxu0 0.0
    %600 = vmatprep.subr.mxu0 0.0
    %601 = vmatpush1.msra.mxu0 0.0
    %602 = vmatprep.subr.mxu0 0.0
    %603 = vmatpush1.msra.mxu0 0.0
    %604 = vmatprep.subr.mxu0 0.0
    %605 = vmatpush1.msra.mxu0 0.0
    %606 = vmatprep.subr.mxu0 0.0
    %607 = vmatpush1.msra.mxu0 0.0
    %608 = vmatprep.subr.mxu0 0.0
    %609 = vmatpush1.msra.mxu0 0.0
    %610 = vmatprep.subr.mxu0 0.0
    %611 = vmatpush1.msra.mxu0 0.0
    %612 = vmatprep.subr.mxu0 0.0
    %613 = vmatpush1.msra.mxu0 0.0
    %614 = vmatprep.subr.mxu0 0.0
    %615 = vmatpush1.msra.mxu0 0.0
    %616 = vmatprep.subr.mxu0 0.0
    %617 = vmatpush1.msra.mxu0 0.0
    %618 = vmatprep.subr.mxu0 0.0
    %619 = vmatpush1.msra.mxu0 0.0
    %620 = vmatprep.subr.mxu0 0.0
    %621 = vmatpush1.msra.mxu0 0.0
    %622 = vmatprep.subr.mxu0 0.0
    %623 = vmatpush1.msra.mxu0 0.0
    %624 = vmatprep.subr.mxu0 0.0
    %625 = vmatpush1.msra.mxu0 0.0
    %626 = vmatprep.subr.mxu0 0.0
    %627 = vmatpush1.msra.mxu0 0.0
    %628 = vmatprep.subr.mxu0 0.0
    %629 = vmatpush1.msra.mxu0 0.0
    %630 = vmatprep.subr.mxu0 0.0
    %631 = vmatpush1.msra.mxu0 0.0
    %632 = vmatprep.subr.mxu0 0.0
    %633 = vmatpush1.msra.mxu0 0.0
    %634 = vmatprep.subr.mxu0 0.0
    %635 = vmatpush1.msra.mxu0 0.0
    %636 = vmatprep.subr.mxu0 0.0
    %637 = vmatpush1.msra.mxu0 0.0
    %638 = vmatprep.mubr.f32.mxu0 0.0
    %639 = vmatmul.mubr.f32.gmra.mrb[0].mxu0 %v572
    %v640 = vpop.f32.mrb[0].mxu0
    %v641 = vadd.f32 0.0, %v640
    %v642 = vpop.f32.mrb[0].mxu0
    %643 = vdwg.mxu0
    %644 = vrot.lane.b32.xlu0 %v273, 112
    %v645 = vpop.permute.xlu0 %644
    %646 = vrot.lane.b32.xlu0 %v273, 80
    %v647 = vpop.permute.xlu0 %646
    %v648 = vsel %vm312, %v645, 0
    %v650 = vsel %vm312, %v647, 0
    %652 = vmatprep.subr.mxu0 0.0
    %653 = vmatpush1.xpose.msra.mxu0 %v650
    %654 = vmatprep.subr.mxu0 0.0
    %655 = vmatpush1.xpose.msra.mxu0 0.0
    %656 = vmatprep.subr.mxu0 0.0
    %657 = vmatpush1.xpose.msra.mxu0 0.0
    %658 = vmatprep.subr.mxu0 0.0
    %659 = vmatpush1.xpose.msra.mxu0 0.0
    %660 = vmatprep.subr.mxu0 0.0
    %661 = vmatpush1.xpose.msra.mxu0 0.0
    %662 = vmatprep.subr.mxu0 0.0
    %663 = vmatpush1.xpose.msra.mxu0 0.0
    %664 = vmatprep.subr.mxu0 0.0
    %665 = vmatpush1.xpose.msra.mxu0 0.0
    %666 = vmatprep.subr.mxu0 0.0
    %667 = vmatpush1.xpose.msra.mxu0 0.0
    %668 = vmatprep.subr.mxu0 0.0
    %669 = vmatpush1.xpose.msra.mxu0 0.0
    %670 = vmatprep.subr.mxu0 0.0
    %671 = vmatpush1.xpose.msra.mxu0 0.0
    %672 = vmatprep.subr.mxu0 0.0
    %673 = vmatpush1.xpose.msra.mxu0 0.0
    %674 = vmatprep.subr.mxu0 0.0
    %675 = vmatpush1.xpose.msra.mxu0 0.0
    %676 = vmatprep.subr.mxu0 0.0
    %677 = vmatpush1.xpose.msra.mxu0 0.0
    %678 = vmatprep.subr.mxu0 0.0
    %679 = vmatpush1.xpose.msra.mxu0 0.0
    %680 = vmatprep.subr.mxu0 0.0
    %681 = vmatpush1.xpose.msra.mxu0 0.0
    %682 = vmatprep.subr.mxu0 0.0
    %683 = vmatpush1.xpose.msra.mxu0 0.0
    %684 = vmatprep.subr.mxu0 0.0
    %685 = vmatpush1.xpose.msra.mxu0 0.0
    %686 = vmatprep.subr.mxu0 0.0
    %687 = vmatpush1.xpose.msra.mxu0 0.0
    %688 = vmatprep.subr.mxu0 0.0
    %689 = vmatpush1.xpose.msra.mxu0 0.0
    %690 = vmatprep.subr.mxu0 0.0
    %691 = vmatpush1.xpose.msra.mxu0 0.0
    %692 = vmatprep.subr.mxu0 0.0
    %693 = vmatpush1.xpose.msra.mxu0 0.0
    %694 = vmatprep.subr.mxu0 0.0
    %695 = vmatpush1.xpose.msra.mxu0 0.0
    %696 = vmatprep.subr.mxu0 0.0
    %697 = vmatpush1.xpose.msra.mxu0 0.0
    %698 = vmatprep.subr.mxu0 0.0
    %699 = vmatpush1.xpose.msra.mxu0 0.0
    %700 = vmatprep.subr.mxu0 0.0
    %701 = vmatpush1.xpose.msra.mxu0 0.0
    %702 = vmatprep.subr.mxu0 0.0
    %703 = vmatpush1.xpose.msra.mxu0 0.0
    %704 = vmatprep.subr.mxu0 0.0
    %705 = vmatpush1.xpose.msra.mxu0 0.0
    %706 = vmatprep.subr.mxu0 0.0
    %707 = vmatpush1.xpose.msra.mxu0 0.0
    %708 = vmatprep.subr.mxu0 0.0
    %709 = vmatpush1.xpose.msra.mxu0 0.0
    %710 = vmatprep.subr.mxu0 0.0
    %711 = vmatpush1.xpose.msra.mxu0 0.0
    %712 = vmatprep.subr.mxu0 0.0
    %713 = vmatpush1.xpose.msra.mxu0 0.0
    %714 = vmatprep.subr.mxu0 0.0
    %715 = vmatpush1.xpose.msra.mxu0 0.0
    %716 = vmatprep.mubr.f32.mxu0 0.0
    %717 = vmatmul.mubr.f32.gmra.mrb[0].mxu0 %v648
    %v718 = vpop.f32.mrb[0].mxu0
    %v719 = vadd.f32 0.0, %v718
    %v720 = vpop.f32.mrb[0].mxu0
    %721 = vdwg.mxu0
    %722 = vrot.lane.b32.xlu0 %v278, 112
    %v723 = vpop.permute.xlu0 %722
    %724 = vrot.lane.b32.xlu0 %v278, 80
    %v725 = vpop.permute.xlu0 %724
    %v726 = vsel %vm312, %v723, 0
    %v728 = vsel %vm312, %v725, 0
    %730 = vmatprep.subr.mxu0 0.0
    %731 = vmatpush1.xpose.msra.mxu0 %v728
    %732 = vmatprep.subr.mxu0 0.0
    %733 = vmatpush1.xpose.msra.mxu0 0.0
    %734 = vmatprep.subr.mxu0 0.0
    %735 = vmatpush1.xpose.msra.mxu0 0.0
    %736 = vmatprep.subr.mxu0 0.0
    %737 = vmatpush1.xpose.msra.mxu0 0.0
    %738 = vmatprep.subr.mxu0 0.0
    %739 = vmatpush1.xpose.msra.mxu0 0.0
    %740 = vmatprep.subr.mxu0 0.0
    %741 = vmatpush1.xpose.msra.mxu0 0.0
    %742 = vmatprep.subr.mxu0 0.0
    %743 = vmatpush1.xpose.msra.mxu0 0.0
    %744 = vmatprep.subr.mxu0 0.0
    %745 = vmatpush1.xpose.msra.mxu0 0.0
    %746 = vmatprep.subr.mxu0 0.0
    %747 = vmatpush1.xpose.msra.mxu0 0.0
    %748 = vmatprep.subr.mxu0 0.0
    %749 = vmatpush1.xpose.msra.mxu0 0.0
    %750 = vmatprep.subr.mxu0 0.0
    %751 = vmatpush1.xpose.msra.mxu0 0.0
    %752 = vmatprep.subr.mxu0 0.0
    %753 = vmatpush1.xpose.msra.mxu0 0.0
    %754 = vmatprep.subr.mxu0 0.0
    %755 = vmatpush1.xpose.msra.mxu0 0.0
    %756 = vmatprep.subr.mxu0 0.0
    %757 = vmatpush1.xpose.msra.mxu0 0.0
    %758 = vmatprep.subr.mxu0 0.0
    %759 = vmatpush1.xpose.msra.mxu0 0.0
    %760 = vmatprep.subr.mxu0 0.0
    %761 = vmatpush1.xpose.msra.mxu0 0.0
    %762 = vmatprep.subr.mxu0 0.0
    %763 = vmatpush1.xpose.msra.mxu0 0.0
    %764 = vmatprep.subr.mxu0 0.0
    %765 = vmatpush1.xpose.msra.mxu0 0.0
    %766 = vmatprep.subr.mxu0 0.0
    %767 = vmatpush1.xpose.msra.mxu0 0.0
    %768 = vmatprep.subr.mxu0 0.0
    %769 = vmatpush1.xpose.msra.mxu0 0.0
    %770 = vmatprep.subr.mxu0 0.0
    %771 = vmatpush1.xpose.msra.mxu0 0.0
    %772 = vmatprep.subr.mxu0 0.0
    %773 = vmatpush1.xpose.msra.mxu0 0.0
    %774 = vmatprep.subr.mxu0 0.0
    %775 = vmatpush1.xpose.msra.mxu0 0.0
    %776 = vmatprep.subr.mxu0 0.0
    %777 = vmatpush1.xpose.msra.mxu0 0.0
    %778 = vmatprep.subr.mxu0 0.0
    %779 = vmatpush1.xpose.msra.mxu0 0.0
    %780 = vmatprep.subr.mxu0 0.0
    %781 = vmatpush1.xpose.msra.mxu0 0.0
    %782 = vmatprep.subr.mxu0 0.0
    %783 = vmatpush1.xpose.msra.mxu0 0.0
    %784 = vmatprep.subr.mxu0 0.0
    %785 = vmatpush1.xpose.msra.mxu0 0.0
    %786 = vmatprep.subr.mxu0 0.0
    %787 = vmatpush1.xpose.msra.mxu0 0.0
    %788 = vmatprep.subr.mxu0 0.0
    %789 = vmatpush1.xpose.msra.mxu0 0.0
    %790 = vmatprep.subr.mxu0 0.0
    %791 = vmatpush1.xpose.msra.mxu0 0.0
    %792 = vmatprep.subr.mxu0 0.0
    %793 = vmatpush1.xpose.msra.mxu0 0.0
    %794 = vmatprep.mubr.f32.mxu0 0.0
    %795 = vmatmul.mubr.f32.gmra.mrb[0].mxu0 %v726
    %v796 = vpop.f32.mrb[0].mxu0
    %v797 = vadd.f32 0.0, %v796
    %v798 = vpop.f32.mrb[0].mxu0
    %799 = vdwg.mxu0
    %v800 = vmul.f32 %v719, 0.25
    %v801 = vmul.f32 %v797, 0.25
    %v802 = vadd.f32 %v800, %v299
    %v803 = vadd.f32 %v801, %v306
    %v804 = vsel %vm468, %v802, -inf
    %805 = vmax.xlane.f32.xlu0 %v804
    %v806 = vpop.xlane.xlu0 %805
    %v807 = vsel %vm468, %v803, -inf
    %808 = vmax.xlane.f32.xlu0 %v807
    %v809 = vpop.xlane.xlu0 %808
    %v810 = vsub.f32 %v802, %v806
    %v811 = vsub.f32 %v803, %v809
    %v812 = vmul.f32 %v810, 1.442695
    %v813 = vpow.pop %v812
    %v814 = vmul.f32 %v811, 1.442695
    %v815 = vpow.pop %v814
    %v816 = vsel %vm468, %v813, 0.0
    %817 = vadd.xlane.f32.xlu0 %v816
    %v818 = vpop.xlane.xlu0 %817
    %v819 = vsel %vm468, %v815, 0.0
    %820 = vadd.xlane.f32.xlu0 %v819
    %v821 = vpop.xlane.xlu0 %820
    %v822 = vrcp.pop %v818
    %v823 = vrcp.pop %v821
    %v824 = vmul.f32 %v813, %v822
    %v825 = vmul.f32 %v815, %v823
    %826 = vrot.lane.b32.xlu0 %v273, 48
    %v827 = vpop.permute.xlu0 %826
    %v830 = vsel %vm494, %v824, 0
    %832 = vmatprep.subr.mxu0 0.0
    %833 = vmatpush1.msra.mxu0 %v827
    %834 = vmatprep.subr.mxu0 0.0
    %835 = vmatpush1.msra.mxu0 0.0
    %836 = vmatprep.subr.mxu0 0.0
    %837 = vmatpush1.msra.mxu0 0.0
    %838 = vmatprep.subr.mxu0 0.0
    %839 = vmatpush1.msra.mxu0 0.0
    %840 = vmatprep.subr.mxu0 0.0
    %841 = vmatpush1.msra.mxu0 0.0
    %842 = vmatprep.subr.mxu0 0.0
    %843 = vmatpush1.msra.mxu0 0.0
    %844 = vmatprep.subr.mxu0 0.0
    %845 = vmatpush1.msra.mxu0 0.0
    %846 = vmatprep.subr.mxu0 0.0
    %847 = vmatpush1.msra.mxu0 0.0
    %848 = vmatprep.subr.mxu0 0.0
    %849 = vmatpush1.msra.mxu0 0.0
    %850 = vmatprep.subr.mxu0 0.0
    %851 = vmatpush1.msra.mxu0 0.0
    %852 = vmatprep.subr.mxu0 0.0
    %853 = vmatpush1.msra.mxu0 0.0
    %854 = vmatprep.subr.mxu0 0.0
    %855 = vmatpush1.msra.mxu0 0.0
    %856 = vmatprep.subr.mxu0 0.0
    %857 = vmatpush1.msra.mxu0 0.0
    %858 = vmatprep.subr.mxu0 0.0
    %859 = vmatpush1.msra.mxu0 0.0
    %860 = vmatprep.subr.mxu0 0.0
    %861 = vmatpush1.msra.mxu0 0.0
    %862 = vmatprep.subr.mxu0 0.0
    %863 = vmatpush1.msra.mxu0 0.0
    %864 = vmatprep.subr.mxu0 0.0
    %865 = vmatpush1.msra.mxu0 0.0
    %866 = vmatprep.subr.mxu0 0.0
    %867 = vmatpush1.msra.mxu0 0.0
    %868 = vmatprep.subr.mxu0 0.0
    %869 = vmatpush1.msra.mxu0 0.0
    %870 = vmatprep.subr.mxu0 0.0
    %871 = vmatpush1.msra.mxu0 0.0
    %872 = vmatprep.subr.mxu0 0.0
    %873 = vmatpush1.msra.mxu0 0.0
    %874 = vmatprep.subr.mxu0 0.0
    %875 = vmatpush1.msra.mxu0 0.0
    %876 = vmatprep.subr.mxu0 0.0
    %877 = vmatpush1.msra.mxu0 0.0
    %878 = vmatprep.subr.mxu0 0.0
    %879 = vmatpush1.msra.mxu0 0.0
    %880 = vmatprep.subr.mxu0 0.0
    %881 = vmatpush1.msra.mxu0 0.0
    %882 = vmatprep.subr.mxu0 0.0
    %883 = vmatpush1.msra.mxu0 0.0
    %884 = vmatprep.subr.mxu0 0.0
    %885 = vmatpush1.msra.mxu0 0.0
    %886 = vmatprep.subr.mxu0 0.0
    %887 = vmatpush1.msra.mxu0 0.0
    %888 = vmatprep.subr.mxu0 0.0
    %889 = vmatpush1.msra.mxu0 0.0
    %890 = vmatprep.subr.mxu0 0.0
    %891 = vmatpush1.msra.mxu0 0.0
    %892 = vmatprep.subr.mxu0 0.0
    %893 = vmatpush1.msra.mxu0 0.0
    %894 = vmatprep.subr.mxu0 0.0
    %895 = vmatpush1.msra.mxu0 0.0
    %896 = vmatprep.mubr.f32.mxu0 0.0
    %897 = vmatmul.mubr.f32.gmra.mrb[0].mxu0 %v830
    %v898 = vpop.f32.mrb[0].mxu0
    %v899 = vadd.f32 0.0, %v898
    %v900 = vpop.f32.mrb[0].mxu0
    %901 = vdwg.mxu0
    %902 = vrot.lane.b32.xlu0 %v278, 48
    %v903 = vpop.permute.xlu0 %902
    %v906 = vsel %vm494, %v825, 0
    %908 = vmatprep.subr.mxu0 0.0
    %909 = vmatpush1.msra.mxu0 %v903
    %910 = vmatprep.subr.mxu0 0.0
    %911 = vmatpush1.msra.mxu0 0.0
    %912 = vmatprep.subr.mxu0 0.0
    %913 = vmatpush1.msra.mxu0 0.0
    %914 = vmatprep.subr.mxu0 0.0
    %915 = vmatpush1.msra.mxu0 0.0
    %916 = vmatprep.subr.mxu0 0.0
    %917 = vmatpush1.msra.mxu0 0.0
    %918 = vmatprep.subr.mxu0 0.0
    %919 = vmatpush1.msra.mxu0 0.0
    %920 = vmatprep.subr.mxu0 0.0
    %921 = vmatpush1.msra.mxu0 0.0
    %922 = vmatprep.subr.mxu0 0.0
    %923 = vmatpush1.msra.mxu0 0.0
    %924 = vmatprep.subr.mxu0 0.0
    %925 = vmatpush1.msra.mxu0 0.0
    %926 = vmatprep.subr.mxu0 0.0
    %927 = vmatpush1.msra.mxu0 0.0
    %928 = vmatprep.subr.mxu0 0.0
    %929 = vmatpush1.msra.mxu0 0.0
    %930 = vmatprep.subr.mxu0 0.0
    %931 = vmatpush1.msra.mxu0 0.0
    %932 = vmatprep.subr.mxu0 0.0
    %933 = vmatpush1.msra.mxu0 0.0
    %934 = vmatprep.subr.mxu0 0.0
    %935 = vmatpush1.msra.mxu0 0.0
    %936 = vmatprep.subr.mxu0 0.0
    %937 = vmatpush1.msra.mxu0 0.0
    %938 = vmatprep.subr.mxu0 0.0
    %939 = vmatpush1.msra.mxu0 0.0
    %940 = vmatprep.subr.mxu0 0.0
    %941 = vmatpush1.msra.mxu0 0.0
    %942 = vmatprep.subr.mxu0 0.0
    %943 = vmatpush1.msra.mxu0 0.0
    %944 = vmatprep.subr.mxu0 0.0
    %945 = vmatpush1.msra.mxu0 0.0
    %946 = vmatprep.subr.mxu0 0.0
    %947 = vmatpush1.msra.mxu0 0.0
    %948 = vmatprep.subr.mxu0 0.0
    %949 = vmatpush1.msra.mxu0 0.0
    %950 = vmatprep.subr.mxu0 0.0
    %951 = vmatpush1.msra.mxu0 0.0
    %952 = vmatprep.subr.mxu0 0.0
    %953 = vmatpush1.msra.mxu0 0.0
    %954 = vmatprep.subr.mxu0 0.0
    %955 = vmatpush1.msra.mxu0 0.0
    %956 = vmatprep.subr.mxu0 0.0
    %957 = vmatpush1.msra.mxu0 0.0
    %958 = vmatprep.subr.mxu0 0.0
    %959 = vmatpush1.msra.mxu0 0.0
    %960 = vmatprep.subr.mxu0 0.0
    %961 = vmatpush1.msra.mxu0 0.0
    %962 = vmatprep.subr.mxu0 0.0
    %963 = vmatpush1.msra.mxu0 0.0
    %964 = vmatprep.subr.mxu0 0.0
    %965 = vmatpush1.msra.mxu0 0.0
    %966 = vmatprep.subr.mxu0 0.0
    %967 = vmatpush1.msra.mxu0 0.0
    %968 = vmatprep.subr.mxu0 0.0
    %969 = vmatpush1.msra.mxu0 0.0
    %970 = vmatprep.subr.mxu0 0.0
    %971 = vmatpush1.msra.mxu0 0.0
    %972 = vmatprep.mubr.f32.mxu0 0.0
    %973 = vmatmul.mubr.f32.gmra.mrb[0].mxu0 %v906
    %v974 = vpop.f32.mrb[0].mxu0
    %v975 = vadd.f32 0.0, %v974
    %v976 = vpop.f32.mrb[0].mxu0
    %977 = vdwg.mxu0
    %980 = vrot.lane.b32.xlu0 %v899, 16
    %v981 = vpop.permute.xlu0 %980
    %982 = vrot.lane.b32.xlu0 %v975, 16
    %v983 = vpop.permute.xlu0 %982
    %v986 = vsel %vm312, %v565, %v981
    %v987 = vsel %vm312, %v641, %v983
    %v988 = vlaneseq
    %v989 = vshrl.u32 %v988, 7
    %v990 = vsub.s32 0, %v989
    %v991 = vrot.slane %v86, %v990
    %v994 = vrot.slane %v987, 7
    %vm995 = vcmask 1041409
    %v996 = vsel %vm995, %v994, %v986
    %v997 = vsel %vm199, %v996, 0
    %999 = vmatprep.subr.mxu0 0.0
    %1000 = vmatpush1.msra.mxu0 %v56
    %1001 = vmatprep.subr.mxu0 0.0
    %1002 = vmatpush1.msra.mxu0 %v57
    %1003 = vmatprep.subr.mxu0 0.0
    %1004 = vmatpush1.msra.mxu0 %v58
    %1005 = vmatprep.subr.mxu0 0.0
    %1006 = vmatpush1.msra.mxu0 %v59
    %1007 = vmatprep.subr.mxu0 0.0
    %1008 = vmatpush1.msra.mxu0 0.0
    %1009 = vmatprep.subr.mxu0 0.0
    %1010 = vmatpush1.msra.mxu0 0.0
    %1011 = vmatprep.subr.mxu0 0.0
    %1012 = vmatpush1.msra.mxu0 0.0
    %1013 = vmatprep.subr.mxu0 0.0
    %1014 = vmatpush1.msra.mxu0 0.0
    %1015 = vmatprep.subr.mxu0 0.0
    %1016 = vmatpush1.msra.mxu0 0.0
    %1017 = vmatprep.subr.mxu0 0.0
    %1018 = vmatpush1.msra.mxu0 0.0
    %1019 = vmatprep.subr.mxu0 0.0
    %1020 = vmatpush1.msra.mxu0 0.0
    %1021 = vmatprep.subr.mxu0 0.0
    %1022 = vmatpush1.msra.mxu0 0.0
    %1023 = vmatprep.subr.mxu0 0.0
    %1024 = vmatpush1.msra.mxu0 0.0
    %1025 = vmatprep.subr.mxu0 0.0
    %1026 = vmatpush1.msra.mxu0 0.0
    %1027 = vmatprep.subr.mxu0 0.0
    %1028 = vmatpush1.msra.mxu0 0.0
    %1029 = vmatprep.subr.mxu0 0.0
    %1030 = vmatpush1.msra.mxu0 0.0
    %1031 = vmatprep.subr.mxu0 0.0
    %1032 = vmatpush1.msra.mxu0 0.0
    %1033 = vmatprep.subr.mxu0 0.0
    %1034 = vmatpush1.msra.mxu0 0.0
    %1035 = vmatprep.subr.mxu0 0.0
    %1036 = vmatpush1.msra.mxu0 0.0
    %1037 = vmatprep.subr.mxu0 0.0
    %1038 = vmatpush1.msra.mxu0 0.0
    %1039 = vmatprep.subr.mxu0 0.0
    %1040 = vmatpush1.msra.mxu0 0.0
    %1041 = vmatprep.subr.mxu0 0.0
    %1042 = vmatpush1.msra.mxu0 0.0
    %1043 = vmatprep.subr.mxu0 0.0
    %1044 = vmatpush1.msra.mxu0 0.0
    %1045 = vmatprep.subr.mxu0 0.0
    %1046 = vmatpush1.msra.mxu0 0.0
    %1047 = vmatprep.subr.mxu0 0.0
    %1048 = vmatpush1.msra.mxu0 0.0
    %1049 = vmatprep.subr.mxu0 0.0
    %1050 = vmatpush1.msra.mxu0 0.0
    %1051 = vmatprep.subr.mxu0 0.0
    %1052 = vmatpush1.msra.mxu0 0.0
    %1053 = vmatprep.subr.mxu0 0.0
    %1054 = vmatpush1.msra.mxu0 0.0
    %1055 = vmatprep.subr.mxu0 0.0
    %1056 = vmatpush1.msra.mxu0 0.0
    %1057 = vmatprep.subr.mxu0 0.0
    %1058 = vmatpush1.msra.mxu0 0.0
    %1059 = vmatprep.subr.mxu0 0.0
    %1060 = vmatpush1.msra.mxu0 0.0
    %1061 = vmatprep.subr.mxu0 0.0
    %1062 = vmatpush1.msra.mxu0 0.0
    %1063 = vmatprep.mubr.f32.mxu0 0.0
    %1064 = vmatmul.mubr.f32.gmra.mrb[0].mxu0 %v997
    %v1065 = vpop.f32.mrb[0].mxu0
    %v1066 = vadd.f32 %v991, %v1065
    %v1067 = vpop.f32.mrb[0].mxu0
    %1068 = vdwg.mxu0
    %v1070 = vrot.slane %v1066, 1
    %v1073 = vadd.f32 %v193, %v1066
    %v1074 = vadd.f32 %v194, %v1070
    %v1077 = vrot.slane %v1074, 7
    %v1078 = vsel %vm995, %v1077, %v1073
    %vm1080 = vcmask 254976
    %v1081 = vsel %vm1080, %v1078, 0.0
    %1082 = vadd.xlane.f32.xlu0 %v1081
    %v1083 = vpop.xlane.xlu0 %1082
    %v1084 = vrcp.pop 32.0
    %v1085 = vmul.f32 %v1083, %v1084
    %v1087 = vrot.slane %v1085, 1
    %v1090 = vsub.f32 %v1073, %v1085
    %v1091 = vsub.f32 %v1074, %v1087
    %v1092 = vmul.f32 %v1090, %v1090
    %v1093 = vmul.f32 %v1091, %v1091
    %v1096 = vrot.slane %v1093, 7
    %v1097 = vsel %vm995, %v1096, %v1092
    %v1099 = vsel %vm1080, %v1097, 0.0
    %1100 = vadd.xlane.f32.xlu0 %v1099
    %v1101 = vpop.xlane.xlu0 %1100
    %v1102 = vmul.f32 %v1101, %v1084
    %v1103 = vadd.f32 %v1102, 1e-05
    %v1104 = vrsqrt.pop %v1103
    %v1106 = vrot.slane %v1104, 1
    %v1109 = vmul.f32 %v1090, %v1104
    %v1110 = vmul.f32 %v1091, %v1106
    %v1111 = vlaneseq
    %v1112 = vshrl.u32 %v1111, 7
    %v1113 = vsub.s32 0, %v1112
    %v1114 = vrot.slane %v87, %v1113
    %v1115 = vmul.f32 %v1109, %v1114
    %v1116 = vmul.f32 %v1110, %v1114
    %v1117 = vlaneseq
    %v1118 = vshrl.u32 %v1117, 7
    %v1119 = vsub.s32 0, %v1118
    %v1120 = vrot.slane %v88, %v1119
    %v1121 = vadd.f32 %v1115, %v1120
    %v1122 = vadd.f32 %v1116, %v1120
    %v1123 = vlaneseq
    %v1124 = vshrl.u32 %v1123, 7
    %v1125 = vsub.s32 0, %v1124
    %v1126 = vrot.slane %v89, %v1125
    %v1129 = vrot.slane %v1122, 7
    %v1130 = vsel %vm995, %v1129, %v1121
    %v1131 = vsel %vm199, %v1130, 0
    %1133 = vmatprep.subr.mxu0 0.0
    %1134 = vmatpush1.msra.mxu0 %v52
    %1135 = vmatprep.subr.mxu0 0.0
    %1136 = vmatpush1.msra.mxu0 %v53
    %1137 = vmatprep.subr.mxu0 0.0
    %1138 = vmatpush1.msra.mxu0 %v54
    %1139 = vmatprep.subr.mxu0 0.0
    %1140 = vmatpush1.msra.mxu0 %v55
    %1141 = vmatprep.subr.mxu0 0.0
    %1142 = vmatpush1.msra.mxu0 0.0
    %1143 = vmatprep.subr.mxu0 0.0
    %1144 = vmatpush1.msra.mxu0 0.0
    %1145 = vmatprep.subr.mxu0 0.0
    %1146 = vmatpush1.msra.mxu0 0.0
    %1147 = vmatprep.subr.mxu0 0.0
    %1148 = vmatpush1.msra.mxu0 0.0
    %1149 = vmatprep.subr.mxu0 0.0
    %1150 = vmatpush1.msra.mxu0 0.0
    %1151 = vmatprep.subr.mxu0 0.0
    %1152 = vmatpush1.msra.mxu0 0.0
    %1153 = vmatprep.subr.mxu0 0.0
    %1154 = vmatpush1.msra.mxu0 0.0
    %1155 = vmatprep.subr.mxu0 0.0
    %1156 = vmatpush1.msra.mxu0 0.0
    %1157 = vmatprep.subr.mxu0 0.0
    %1158 = vmatpush1.msra.mxu0 0.0
    %1159 = vmatprep.subr.mxu0 0.0
    %1160 = vmatpush1.msra.mxu0 0.0
    %1161 = vmatprep.subr.mxu0 0.0
    %1162 = vmatpush1.msra.mxu0 0.0
    %1163 = vmatprep.subr.mxu0 0.0
    %1164 = vmatpush1.msra.mxu0 0.0
    %1165 = vmatprep.subr.mxu0 0.0
    %1166 = vmatpush1.msra.mxu0 0.0
    %1167 = vmatprep.subr.mxu0 0.0
    %1168 = vmatpush1.msra.mxu0 0.0
    %1169 = vmatprep.subr.mxu0 0.0
    %1170 = vmatpush1.msra.mxu0 0.0
    %1171 = vmatprep.subr.mxu0 0.0
    %1172 = vmatpush1.msra.mxu0 0.0
    %1173 = vmatprep.subr.mxu0 0.0
    %1174 = vmatpush1.msra.mxu0 0.0
    %1175 = vmatprep.subr.mxu0 0.0
    %1176 = vmatpush1.msra.mxu0 0.0
    %1177 = vmatprep.subr.mxu0 0.0
    %1178 = vmatpush1.msra.mxu0 0.0
    %1179 = vmatprep.subr.mxu0 0.0
    %1180 = vmatpush1.msra.mxu0 0.0
    %1181 = vmatprep.subr.mxu0 0.0
    %1182 = vmatpush1.msra.mxu0 0.0
    %1183 = vmatprep.subr.mxu0 0.0
    %1184 = vmatpush1.msra.mxu0 0.0
    %1185 = vmatprep.subr.mxu0 0.0
    %1186 = vmatpush1.msra.mxu0 0.0
    %1187 = vmatprep.subr.mxu0 0.0
    %1188 = vmatpush1.msra.mxu0 0.0
    %1189 = vmatprep.subr.mxu0 0.0
    %1190 = vmatpush1.msra.mxu0 0.0
    %1191 = vmatprep.subr.mxu0 0.0
    %1192 = vmatpush1.msra.mxu0 0.0
    %1193 = vmatprep.subr.mxu0 0.0
    %1194 = vmatpush1.msra.mxu0 0.0
    %1195 = vmatprep.subr.mxu0 0.0
    %1196 = vmatpush1.msra.mxu0 0.0
    %1197 = vmatprep.mubr.f32.mxu0 0.0
    %1198 = vmatmul.mubr.f32.gmra.mrb[0].mxu0 %v1131
    %v1199 = vpop.f32.mrb[0].mxu0
    %v1200 = vadd.f32 %v1126, %v1199
    %v1201 = vpop.f32.mrb[0].mxu0
    %1202 = vdwg.mxu0
    %v1203 = vmul.f32 %v1200, 0.5
    %v1204 = vmul.f32 %v1200, 0.044715
    %v1205 = vmul.f32 %v1204, %v1200
    %v1206 = vmul.f32 %v1205, %v1200
    %v1207 = vadd.f32 %v1200, %v1206
    %v1208 = vmul.f32 %v1207, 0.7978846
    %v1209 = vtanh.pop %v1208
    %v1210 = vadd.f32 %v1209, 1.0
    %v1211 = vmul.f32 %v1203, %v1210
    %v1212 = vlaneseq
    %v1213 = vshrl.u32 %v1212, 7
    %v1214 = vsub.s32 0, %v1213
    %v1215 = vrot.slane %v90, %v1214
    %v1217 = vsel %vm111, %v1211, 0
    %1219 = vmatprep.subr.mxu0 0.0
    %1220 = vmatpush1.msra.mxu0 %v68
    %1221 = vmatprep.subr.mxu0 0.0
    %1222 = vmatpush1.msra.mxu0 %v69
    %1223 = vmatprep.subr.mxu0 0.0
    %1224 = vmatpush1.msra.mxu0 %v70
    %1225 = vmatprep.subr.mxu0 0.0
    %1226 = vmatpush1.msra.mxu0 %v71
    %1227 = vmatprep.subr.mxu0 0.0
    %1228 = vmatpush1.msra.mxu0 %v72
    %1229 = vmatprep.subr.mxu0 0.0
    %1230 = vmatpush1.msra.mxu0 %v73
    %1231 = vmatprep.subr.mxu0 0.0
    %1232 = vmatpush1.msra.mxu0 %v74
    %1233 = vmatprep.subr.mxu0 0.0
    %1234 = vmatpush1.msra.mxu0 %v75
    %1235 = vmatprep.subr.mxu0 0.0
    %1236 = vmatpush1.msra.mxu0 0.0
    %1237 = vmatprep.subr.mxu0 0.0
    %1238 = vmatpush1.msra.mxu0 0.0
    %1239 = vmatprep.subr.mxu0 0.0
    %1240 = vmatpush1.msra.mxu0 0.0
    %1241 = vmatprep.subr.mxu0 0.0
    %1242 = vmatpush1.msra.mxu0 0.0
    %1243 = vmatprep.subr.mxu0 0.0
    %1244 = vmatpush1.msra.mxu0 0.0
    %1245 = vmatprep.subr.mxu0 0.0
    %1246 = vmatpush1.msra.mxu0 0.0
    %1247 = vmatprep.subr.mxu0 0.0
    %1248 = vmatpush1.msra.mxu0 0.0
    %1249 = vmatprep.subr.mxu0 0.0
    %1250 = vmatpush1.msra.mxu0 0.0
    %1251 = vmatprep.subr.mxu0 0.0
    %1252 = vmatpush1.msra.mxu0 0.0
    %1253 = vmatprep.subr.mxu0 0.0
    %1254 = vmatpush1.msra.mxu0 0.0
    %1255 = vmatprep.subr.mxu0 0.0
    %1256 = vmatpush1.msra.mxu0 0.0
    %1257 = vmatprep.subr.mxu0 0.0
    %1258 = vmatpush1.msra.mxu0 0.0
    %1259 = vmatprep.subr.mxu0 0.0
    %1260 = vmatpush1.msra.mxu0 0.0
    %1261 = vmatprep.subr.mxu0 0.0
    %1262 = vmatpush1.msra.mxu0 0.0
    %1263 = vmatprep.subr.mxu0 0.0
    %1264 = vmatpush1.msra.mxu0 0.0
    %1265 = vmatprep.subr.mxu0 0.0
    %1266 = vmatpush1.msra.mxu0 0.0
    %1267 = vmatprep.subr.mxu0 0.0
    %1268 = vmatpush1.msra.mxu0 0.0
    %1269 = vmatprep.subr.mxu0 0.0
    %1270 = vmatpush1.msra.mxu0 0.0
    %1271 = vmatprep.subr.mxu0 0.0
    %1272 = vmatpush1.msra.mxu0 0.0
    %1273 = vmatprep.subr.mxu0 0.0
    %1274 = vmatpush1.msra.mxu0 0.0
    %1275 = vmatprep.subr.mxu0 0.0
    %1276 = vmatpush1.msra.mxu0 0.0
    %1277 = vmatprep.subr.mxu0 0.0
    %1278 = vmatpush1.msra.mxu0 0.0
    %1279 = vmatprep.subr.mxu0 0.0
    %1280 = vmatpush1.msra.mxu0 0.0
    %1281 = vmatprep.subr.mxu0 0.0
    %1282 = vmatpush1.msra.mxu0 0.0
    %1283 = vmatprep.mubr.f32.mxu0 0.0
    %1284 = vmatmul.mubr.f32.gmra.mrb[0].mxu0 %v1217
    %v1285 = vpop.f32.mrb[0].mxu0
    %v1286 = vadd.f32 %v1215, %v1285
    %v1287 = vpop.f32.mrb[0].mxu0
    %1288 = vdwg.mxu0
    %v1290 = vrot.slane %v1286, 1
    %v1293 = vadd.f32 %v1121, %v1286
    %v1294 = vadd.f32 %v1122, %v1290
    %v1297 = vrot.slane %v1294, 7
    %v1298 = vsel %vm995, %v1297, %v1293
    %v1300 = vsel %vm1080, %v1298, 0.0
    %1301 = vadd.xlane.f32.xlu0 %v1300
    %v1302 = vpop.xlane.xlu0 %1301
    %v1303 = vmul.f32 %v1302, %v1084
    %v1305 = vrot.slane %v1303, 1
    %v1308 = vsub.f32 %v1293, %v1303
    %v1309 = vsub.f32 %v1294, %v1305
    %v1310 = vmul.f32 %v1308, %v1308
    %v1311 = vmul.f32 %v1309, %v1309
    %v1314 = vrot.slane %v1311, 7
    %v1315 = vsel %vm995, %v1314, %v1310
    %v1317 = vsel %vm1080, %v1315, 0.0
    %1318 = vadd.xlane.f32.xlu0 %v1317
    %v1319 = vpop.xlane.xlu0 %1318
    %v1320 = vmul.f32 %v1319, %v1084
    %v1321 = vadd.f32 %v1320, 1e-05
    %v1322 = vrsqrt.pop %v1321
    %v1324 = vrot.slane %v1322, 1
    %v1327 = vmul.f32 %v1308, %v1322
    %v1328 = vmul.f32 %v1309, %v1324
    %v1329 = vlaneseq
    %v1330 = vshrl.u32 %v1329, 7
    %v1331 = vsub.s32 0, %v1330
    %v1332 = vrot.slane %v91, %v1331
    %v1333 = vmul.f32 %v1327, %v1332
    %v1334 = vmul.f32 %v1328, %v1332
    %v1335 = vlaneseq
    %v1336 = vshrl.u32 %v1335, 7
    %v1337 = vsub.s32 0, %v1336
    %v1338 = vrot.slane %v92, %v1337
    %v1339 = vadd.f32 %v1333, %v1338
    %v1340 = vadd.f32 %v1334, %v1338
    %v1341 = vlaneseq
    %v1342 = vshrl.u32 %v1341, 7
    %v1343 = vsub.s32 0, %v1342
    %v1344 = vrot.slane %v93, %v1343
    %v1347 = vrot.slane %v1340, 7
    %v1348 = vsel %vm995, %v1347, %v1339
    %v1349 = vsel %vm199, %v1348, 0
    %1351 = vmatprep.subr.mxu0 0.0
    %1352 = vmatpush1.msra.mxu0 %v60
    %1353 = vmatprep.subr.mxu0 0.0
    %1354 = vmatpush1.msra.mxu0 %v61
    %1355 = vmatprep.subr.mxu0 0.0
    %1356 = vmatpush1.msra.mxu0 %v62
    %1357 = vmatprep.subr.mxu0 0.0
    %1358 = vmatpush1.msra.mxu0 %v63
    %1359 = vmatprep.subr.mxu0 0.0
    %1360 = vmatpush1.msra.mxu0 0.0
    %1361 = vmatprep.subr.mxu0 0.0
    %1362 = vmatpush1.msra.mxu0 0.0
    %1363 = vmatprep.subr.mxu0 0.0
    %1364 = vmatpush1.msra.mxu0 0.0
    %1365 = vmatprep.subr.mxu0 0.0
    %1366 = vmatpush1.msra.mxu0 0.0
    %1367 = vmatprep.subr.mxu0 0.0
    %1368 = vmatpush1.msra.mxu0 0.0
    %1369 = vmatprep.subr.mxu0 0.0
    %1370 = vmatpush1.msra.mxu0 0.0
    %1371 = vmatprep.subr.mxu0 0.0
    %1372 = vmatpush1.msra.mxu0 0.0
    %1373 = vmatprep.subr.mxu0 0.0
    %1374 = vmatpush1.msra.mxu0 0.0
    %1375 = vmatprep.subr.mxu0 0.0
    %1376 = vmatpush1.msra.mxu0 0.0
    %1377 = vmatprep.subr.mxu0 0.0
    %1378 = vmatpush1.msra.mxu0 0.0
    %1379 = vmatprep.subr.mxu0 0.0
    %1380 = vmatpush1.msra.mxu0 0.0
    %1381 = vmatprep.subr.mxu0 0.0
    %1382 = vmatpush1.msra.mxu0 0.0
    %1383 = vmatprep.subr.mxu0 0.0
    %1384 = vmatpush1.msra.mxu0 0.0
    %1385 = vmatprep.subr.mxu0 0.0
    %1386 = vmatpush1.msra.mxu0 0.0
    %1387 = vmatprep.subr.mxu0 0.0
    %1388 = vmatpush1.msra.mxu0 0.0
    %1389 = vmatprep.subr.mxu0 0.0
    %1390 = vmatpush1.msra.mxu0 0.0
    %1391 = vmatprep.subr.mxu0 0.0
    %1392 = vmatpush1.msra.mxu0 0.0
    %1393 = vmatprep.subr.mxu0 0.0
    %1394 = vmatpush1.msra.mxu0 0.0
    %1395 = vmatprep.subr.mxu0 0.0
    %1396 = vmatpush1.msra.mxu0 0.0
    %1397 = vmatprep.subr.mxu0 0.0
    %1398 = vmatpush1.msra.mxu0 0.0
    %1399 = vmatprep.subr.mxu0 0.0
    %1400 = vmatpush1.msra.mxu0 0.0
    %1401 = vmatprep.subr.mxu0 0.0
    %1402 = vmatpush1.msra.mxu0 0.0
    %1403 = vmatprep.subr.mxu0 0.0
    %1404 = vmatpush1.msra.mxu0 0.0
    %1405 = vmatprep.subr.mxu0 0.0
    %1406 = vmatpush1.msra.mxu0 0.0
    %1407 = vmatprep.subr.mxu0 0.0
    %1408 = vmatpush1.msra.mxu0 0.0
    %1409 = vmatprep.subr.mxu0 0.0
    %1410 = vmatpush1.msra.mxu0 0.0
    %1411 = vmatprep.subr.mxu0 0.0
    %1412 = vmatpush1.msra.mxu0 0.0
    %1413 = vmatprep.subr.mxu0 0.0
    %1414 = vmatpush1.msra.mxu0 0.0
    %1415 = vmatprep.mubr.f32.mxu0 0.0
    %1416 = vmatmul.mubr.f32.gmra.mrb[0].mxu0 %v1349
    %v1417 = vpop.f32.mrb[0].mxu0
    %v1418 = vadd.f32 %v1344, %v1417
    %v1419 = vpop.f32.mrb[0].mxu0
    %1420 = vdwg.mxu0
    %v1421 = vtanh.pop %v1418
    %v1422 = vlaneseq
    %v1423 = vshrl.u32 %v1422, 7
    %v1424 = vsub.s32 0, %v1423
    %v1425 = vrot.slane %v94, %v1424
    %v1427 = vsel %vm199, %v1421, 0
    %1429 = vmatprep.subr.mxu0 0.0
    %1430 = vmatpush1.msra.mxu0 %v64
    %1431 = vmatprep.subr.mxu0 0.0
    %1432 = vmatpush1.msra.mxu0 %v65
    %1433 = vmatprep.subr.mxu0 0.0
    %1434 = vmatpush1.msra.mxu0 %v66
    %1435 = vmatprep.subr.mxu0 0.0
    %1436 = vmatpush1.msra.mxu0 %v67
    %1437 = vmatprep.subr.mxu0 0.0
    %1438 = vmatpush1.msra.mxu0 0.0
    %1439 = vmatprep.subr.mxu0 0.0
    %1440 = vmatpush1.msra.mxu0 0.0
    %1441 = vmatprep.subr.mxu0 0.0
    %1442 = vmatpush1.msra.mxu0 0.0
    %1443 = vmatprep.subr.mxu0 0.0
    %1444 = vmatpush1.msra.mxu0 0.0
    %1445 = vmatprep.subr.mxu0 0.0
    %1446 = vmatpush1.msra.mxu0 0.0
    %1447 = vmatprep.subr.mxu0 0.0
    %1448 = vmatpush1.msra.mxu0 0.0
    %1449 = vmatprep.subr.mxu0 0.0
    %1450 = vmatpush1.msra.mxu0 0.0
    %1451 = vmatprep.subr.mxu0 0.0
    %1452 = vmatpush1.msra.mxu0 0.0
    %1453 = vmatprep.subr.mxu0 0.0
    %1454 = vmatpush1.msra.mxu0 0.0
    %1455 = vmatprep.subr.mxu0 0.0
    %1456 = vmatpush1.msra.mxu0 0.0
    %1457 = vmatprep.subr.mxu0 0.0
    %1458 = vmatpush1.msra.mxu0 0.0
    %1459 = vmatprep.subr.mxu0 0.0
    %1460 = vmatpush1.msra.mxu0 0.0
    %1461 = vmatprep.subr.mxu0 0.0
    %1462 = vmatpush1.msra.mxu0 0.0
    %1463 = vmatprep.subr.mxu0 0.0
    %1464 = vmatpush1.msra.mxu0 0.0
    %1465 = vmatprep.subr.mxu0 0.0
    %1466 = vmatpush1.msra.mxu0 0.0
    %1467 = vmatprep.subr.mxu0 0.0
    %1468 = vmatpush1.msra.mxu0 0.0
    %1469 = vmatprep.subr.mxu0 0.0
    %1470 = vmatpush1.msra.mxu0 0.0
    %1471 = vmatprep.subr.mxu0 0.0
    %1472 = vmatpush1.msra.mxu0 0.0
    %1473 = vmatprep.subr.mxu0 0.0
    %1474 = vmatpush1.msra.mxu0 0.0
    %1475 = vmatprep.subr.mxu0 0.0
    %1476 = vmatpush1.msra.mxu0 0.0
    %1477 = vmatprep.subr.mxu0 0.0
    %1478 = vmatpush1.msra.mxu0 0.0
    %1479 = vmatprep.subr.mxu0 0.0
    %1480 = vmatpush1.msra.mxu0 0.0
    %1481 = vmatprep.subr.mxu0 0.0
    %1482 = vmatpush1.msra.mxu0 0.0
    %1483 = vmatprep.subr.mxu0 0.0
    %1484 = vmatpush1.msra.mxu0 0.0
    %1485 = vmatprep.subr.mxu0 0.0
    %1486 = vmatpush1.msra.mxu0 0.0
    %1487 = vmatprep.subr.mxu0 0.0
    %1488 = vmatpush1.msra.mxu0 0.0
    %1489 = vmatprep.subr.mxu0 0.0
    %1490 = vmatpush1.msra.mxu0 0.0
    %1491 = vmatprep.subr.mxu0 0.0
    %1492 = vmatpush1.msra.mxu0 0.0
    %1493 = vmatprep.mubr.f32.mxu0 0.0
    %1494 = vmatmul.mubr.f32.gmra.mrb[0].mxu0 %v1427
    %v1495 = vpop.f32.mrb[0].mxu0
    %v1496 = vadd.f32 %v1425, %v1495
    %v1497 = vpop.f32.mrb[0].mxu0
    %1498 = vdwg.mxu0
    %vm1499 = vcmp.ge.s32.totalorder %v98, 2
    %vm1500 = vcmp.lt.s32.totalorder %v98, 4
    %vm1501 = vmand %vm1499, %vm1500
    %v1502 = vsel %vm1501, %v1496, -1e+30
    %vm1503 = vcmask 1041408
    %v1504 = vsel %vm1503, %v1502, -inf
    %1505 = vmax.xlane.f32.xlu0 %v1504
    %v1506 = vpop.xlane.xlu0 %1505
    %v1507 = vsub.f32 %v1502, %v1506
    %v1508 = vmul.f32 %v1507, 1.442695
    %v1509 = vpow.pop %v1508
    %v1510 = vsel %vm1503, %v1509, 0.0
    %1511 = vadd.xlane.f32.xlu0 %v1510
    %v1512 = vpop.xlane.xlu0 %1511
    %v1513 = vrcp.pop %v1512
    %v1514 = vmul.f32 %v1509, %v1513
    %vm1515 = vcmp.lt.s32.totalorder %v98, 2
    %v1516 = vsel %vm1515, %v1496, 0.0
    %v1517 = vadd.f32 %v1516, %v1514
    %1518 = vst [vmem:[%s5] sm:$0x3] %v1517
    // Predicated region
    $region30: #{_lambda_.1} parent=1 // pred_check
      _
    $region31: #{_lambda_.1} parent=1 // pred_check_branch
      %1520 = sbr.rel (0) target = $region33
    $region32: #{_lambda_.1} parent=1 // pred_region
      _
    $region33: #{_lambda_.1} parent=1 // pred_fallthru
      _
    // Predicated region
    $region34: #{_lambda_.1} parent=1 // pred_check
      _
    $region35: #{_lambda_.1} parent=1 // pred_check_branch
      %1522 = sbr.rel (0) target = $region37
    $region36: #{_lambda_.1} parent=1 // pred_region
      _
    $region37: #{_lambda_.1} parent=1 // pred_fallthru
      _
    %1523 = vsyncpa [#allocation3], 1
    %1524 = vsyncpa [#allocation5], 1

</llo_original>
